<compile_context>
chip_gen: v6e
topology: v6e:2x2x1
jax: 0.10.0
libtpu: 0.0.40
codegen_flags: <defaults>
</compile_context>

<pallas_src>
import functools

import jax
import jax.numpy as jnp
from jax.experimental import pallas as pl
from jax.experimental.pallas import tpu as pltpu


# ---------------------------------------------------------------------------
# Fused cross-attention layer kernel
# ---------------------------------------------------------------------------

def _fused_cross_attn_kernel(x_ref, ctx_ref, wq_ref, wkv_ref, wo_ref, bo_ref,
                             o_ref, *, heads, dim_head, scale):
    f32 = jnp.float32
    bf16 = jnp.bfloat16
    inner = heads * dim_head

    x = x_ref[0].astype(bf16)            # (tn, d_lat)
    ctx = ctx_ref[0].astype(bf16)        # (M,  d_in)
    wq = wq_ref[...].astype(bf16)        # (d_lat, inner)
    wkv = wkv_ref[...].astype(bf16)      # (d_in,  2*inner)
    wo = wo_ref[...].astype(bf16)        # (inner, d_lat)

    # Projections: bf16 MXU, f32 accumulate.  Outputs are lane-dense
    # (128 / 256 wide) and never leave VMEM.
    q = jnp.dot(x, wq, preferred_element_type=f32)        # (tn, inner)
    kv = jnp.dot(ctx, wkv, preferred_element_type=f32)    # (M, 2*inner)
    q = q.astype(bf16)
    kv = kv.astype(bf16)

    # Per-head attention via static lane slices (no lane-splitting reshapes,
    # no wrapper-side transposes).  heads=8, dim_head=16 -> 8 tiny matmuls.
    head_outs = []
    for h in range(heads):
        lo = h * dim_head
        hi = lo + dim_head
        qh = q[:, lo:hi]                                   # (tn, D)
        kh = kv[:, lo:hi]                                  # (M,  D)
        vh = kv[:, inner + lo:inner + hi]                  # (M,  D)

        # sim = qh @ kh^T  (contract the head dim of both operands)
        sim = jax.lax.dot_general(
            qh, kh, (((1,), (1,)), ((), ())),
            preferred_element_type=f32) * scale            # (tn, M)

        m = jnp.max(sim, axis=-1, keepdims=True)
        p = jnp.exp(sim - m)
        l = jnp.sum(p, axis=-1, keepdims=True)
        attn = p * pl.reciprocal(l, approx=True)           # EUP reciprocal

        head_outs.append(
            jnp.dot(attn.astype(bf16), vh, preferred_element_type=f32))

    out = jnp.concatenate(head_outs, axis=-1)              # (tn, inner) dense

    y = (jnp.dot(out.astype(bf16), wo, preferred_element_type=f32)
         + bo_ref[...])                                    # (tn, d_lat)
    o_ref[0] = y.astype(o_ref.dtype)


def cross_attention(x, context, wq, wkv, wo, bo, *, heads=8, dim_head=16,
                    block_n=256):
    """One fused cross-attention layer.

    x: (B, N, latent_dim), context: (B, M, input_dim) -> (B, N, latent_dim).
    Weights use the JAX convention W: (in_features, out_features), i.e. the
    transpose of torch.nn.Linear.weight; bo: (1, latent_dim).
    """
    B, N, d_lat = x.shape
    _, M, d_in = context.shape
    inner = heads * dim_head
    scale = dim_head ** -0.5

    # Row tile over N: full extent for small N, otherwise a multiple of 8
    # (kept modest so the per-block VMEM stays well inside v7x's 64 MiB).
    if N <= block_n:
        bn = N
    else:
        bn = max(8, (block_n // 8) * 8)
    grid = (B, pl.cdiv(N, bn))

    flops = 2 * B * (N * d_lat * inner          # q projection
                     + M * d_in * 2 * inner     # kv projection
                     + 2 * N * M * inner        # qk^T + attn@v
                     + N * inner * d_lat)       # out projection
    bytes_accessed = 4 * (x.size + context.size + x.size
                          + wq.size + wkv.size + wo.size + bo.size)
    cost = pl.CostEstimate(flops=int(flops),
                           transcendentals=int(B * heads * N * M),
                           bytes_accessed=int(bytes_accessed))

    kernel = functools.partial(_fused_cross_attn_kernel, heads=heads,
                               dim_head=dim_head, scale=scale)

    return pl.pallas_call(
        kernel,
        out_shape=jax.ShapeDtypeStruct((B, N, d_lat), x.dtype),
        grid_spec=pltpu.PrefetchScalarGridSpec(
            num_scalar_prefetch=0,
            grid=grid,
            in_specs=[
                pl.BlockSpec((1, bn, d_lat), lambda b, n: (b, n, 0)),   # x
                pl.BlockSpec((1, M, d_in), lambda b, n: (b, 0, 0)),     # ctx
                pl.BlockSpec((d_lat, inner), lambda b, n: (0, 0)),      # Wq
                pl.BlockSpec((d_in, 2 * inner), lambda b, n: (0, 0)),   # Wkv
                pl.BlockSpec((inner, d_lat), lambda b, n: (0, 0)),      # Wo
                pl.BlockSpec((1, d_lat), lambda b, n: (0, 0)),          # bo
            ],
            out_specs=pl.BlockSpec((1, bn, d_lat), lambda b, n: (b, n, 0)),
        ),
        compiler_params=pltpu.CompilerParams(
            dimension_semantics=("parallel", "parallel")),
        cost_estimate=cost,
    )(x, context, wq, wkv, wo, bo)


@jax.jit
def cross_self_transformer(x, context, layers):
    """Matches CrossSelfTransformer.forward: only the per-layer cross-attention
    is applied (self-attention / feed-forward are never called there)."""
    for (wq, wkv, wo, bo) in layers:
        x = cross_attention(x, context, wq, wkv, wo, bo, heads=8, dim_head=16)
    return x


# ---------------------------------------------------------------------------
# Pure-JAX f32 reference (matches the PyTorch module semantics)
# ---------------------------------------------------------------------------

def _cross_attention_ref(x, context, wq, wkv, wo, bo, heads, dim_head):
    B, N, _ = x.shape
    M = context.shape[1]
    inner = heads * dim_head
    scale = dim_head ** -0.5
    q = x @ wq
    kv = context @ wkv
    k, v = kv[..., :inner], kv[..., inner:]
    qh = q.reshape(B, N, heads, dim_head).transpose(0, 2, 1, 3)
    kh = k.reshape(B, M, heads, dim_head).transpose(0, 2, 1, 3)
    vh = v.reshape(B, M, heads, dim_head).transpose(0, 2, 1, 3)
    sim = jnp.einsum("bhid,bhjd->bhij", qh, kh) * scale
    attn = jax.nn.softmax(sim, axis=-1)
    o = jnp.einsum("bhij,bhjd->bhid", attn, vh)
    o = o.transpose(0, 2, 1, 3).reshape(B, N, inner)
    return o @ wo + bo[0]


def _reference(x, context, layers, heads, dim_head):
    for (wq, wkv, wo, bo) in layers:
        x = _cross_attention_ref(x, context, wq, wkv, wo, bo, heads, dim_head)
    return x


# ---------------------------------------------------------------------------
# Demo / self-test
# ---------------------------------------------------------------------------

if __name__ == "__main__":
    # CrossSelfTransformer(latent_dim=32, input_dim=16, heads=..., dim_head=...)
    # forward only uses the cross-attention, which is hard-coded to
    # heads=8, dim_head=16 -> inner_dim = 128.
    batch, n_latent, n_context = 2, 8, 16
    latent_dim, input_dim = 32, 16
    heads, dim_head = 8, 16
    inner = heads * dim_head
    depth = 1

    key = jax.random.PRNGKey(0)
    keys = jax.random.split(key, 2 + 4 * depth)
    kx, kc, wkeys = keys[0], keys[1], keys[2:]

    x = jax.random.normal(kx, (batch, n_latent, latent_dim), dtype=jnp.float32)
    context = jax.random.normal(kc, (batch, n_context, input_dim),
                                dtype=jnp.float32)

    layers = []
    for layer in range(depth):
        kq, kkv, kwo, kbo = wkeys[4 * layer: 4 * layer + 4]
        lim_q = latent_dim ** -0.5
        lim_kv = input_dim ** -0.5
        lim_o = inner ** -0.5
        wq = jax.random.uniform(kq, (latent_dim, inner), jnp.float32,
                                -lim_q, lim_q)
        wkv = jax.random.uniform(kkv, (input_dim, 2 * inner), jnp.float32,
                                 -lim_kv, lim_kv)
        wo = jax.random.uniform(kwo, (inner, latent_dim), jnp.float32,
                                -lim_o, lim_o)
        bo = jax.random.uniform(kbo, (1, latent_dim), jnp.float32,
                                -lim_o, lim_o)
        layers.append((wq, wkv, wo, bo))

    out = cross_self_transformer(x, context, layers)
    out = jax.block_until_ready(out)

    ref = _reference(x, context, layers, heads, dim_head)
    assert out.shape == (batch, n_latent, latent_dim)
    max_err = float(jnp.max(jnp.abs(out - ref)))
    # Tolerance loosened for bf16 MXU operands (f32 accumulate) and the
    # approximate EUP reciprocal in the softmax.
    assert jnp.allclose(out, ref, atol=5e-2, rtol=5e-2), max_err

    print("KERNEL_OK")
</pallas_src>

<mosaic_0001>
module attributes {stable_mosaic.version = 11 : i64} {
  func.func @_fused_cross_attn_kernel(%arg0: i32, %arg1: i32, %arg2: memref<1x8x32xf32, #tpu.memory_space<vmem>>, %arg3: memref<1x16x16xf32, #tpu.memory_space<vmem>>, %arg4: memref<32x128xf32, #tpu.memory_space<vmem>>, %arg5: memref<16x256xf32, #tpu.memory_space<vmem>>, %arg6: memref<128x32xf32, #tpu.memory_space<vmem>>, %arg7: memref<1x32xf32, #tpu.memory_space<vmem>>, %arg8: memref<1x8x32xf32, #tpu.memory_space<vmem>>) attributes {dimension_semantics = [#tpu.dimension_semantics<parallel>, #tpu.dimension_semantics<parallel>], iteration_bounds = array<i64: 2, 1>, scalar_prefetch = 0 : i64, scratch_operands = 0 : i64, tpu.core_type = #tpu.core_type<tc>, window_params = [{transform_indices = @transform_0, window_bounds = array<i64: 1, 8, 32>}, {transform_indices = @transform_1, window_bounds = array<i64: 1, 16, 16>}, {pipeline_mode = #tpu.pipeline_mode<synchronous>, transform_indices = @transform_2, window_bounds = array<i64: 32, 128>}, {pipeline_mode = #tpu.pipeline_mode<synchronous>, transform_indices = @transform_3, window_bounds = array<i64: 16, 256>}, {pipeline_mode = #tpu.pipeline_mode<synchronous>, transform_indices = @transform_4, window_bounds = array<i64: 128, 32>}, {pipeline_mode = #tpu.pipeline_mode<synchronous>, transform_indices = @transform_5, window_bounds = array<i64: 1, 32>}, {transform_indices = @transform_6, window_bounds = array<i64: 1, 8, 32>}]} {
    %c0 = arith.constant 0 : index
    %c0_0 = arith.constant 0 : index
    %c0_1 = arith.constant 0 : index
    %0 = vector.load %arg2[%c0, %c0_0, %c0_1] : memref<1x8x32xf32, #tpu.memory_space<vmem>>, vector<1x8x32xf32>
    %1 = vector.shape_cast %0 : vector<1x8x32xf32> to vector<8x32xf32>
    %2 = arith.truncf %1 : vector<8x32xf32> to vector<8x32xbf16>
    %c0_2 = arith.constant 0 : index
    %c0_3 = arith.constant 0 : index
    %c0_4 = arith.constant 0 : index
    %3 = vector.load %arg3[%c0_2, %c0_3, %c0_4] : memref<1x16x16xf32, #tpu.memory_space<vmem>>, vector<1x16x16xf32>
    %4 = vector.shape_cast %3 : vector<1x16x16xf32> to vector<16x16xf32>
    %5 = arith.truncf %4 : vector<16x16xf32> to vector<16x16xbf16>
    %c0_5 = arith.constant 0 : index
    %c0_6 = arith.constant 0 : index
    %6 = vector.load %arg4[%c0_5, %c0_6] : memref<32x128xf32, #tpu.memory_space<vmem>>, vector<32x128xf32>
    %7 = arith.truncf %6 : vector<32x128xf32> to vector<32x128xbf16>
    %c0_7 = arith.constant 0 : index
    %c0_8 = arith.constant 0 : index
    %8 = vector.load %arg5[%c0_7, %c0_8] : memref<16x256xf32, #tpu.memory_space<vmem>>, vector<16x256xf32>
    %9 = arith.truncf %8 : vector<16x256xf32> to vector<16x256xbf16>
    %c0_9 = arith.constant 0 : index
    %c0_10 = arith.constant 0 : index
    %10 = vector.load %arg6[%c0_9, %c0_10] : memref<128x32xf32, #tpu.memory_space<vmem>>, vector<128x32xf32>
    %11 = arith.truncf %10 : vector<128x32xf32> to vector<128x32xbf16>
    %cst = arith.constant dense<0.000000e+00> : vector<8x128xf32>
    %12 = tpu.matmul %2, %7, %cst {dimension_numbers = #tpu.dot_dimension_numbers<[1], [0], [0], [1], [0, 0, 1, 1], [], []>} : vector<8x32xbf16>, vector<32x128xbf16>, vector<8x128xf32> -> vector<8x128xf32>
    %cst_11 = arith.constant dense<0.000000e+00> : vector<16x256xf32>
    %13 = tpu.matmul %5, %9, %cst_11 {dimension_numbers = #tpu.dot_dimension_numbers<[1], [0], [0], [1], [0, 0, 1, 1], [], []>} : vector<16x16xbf16>, vector<16x256xbf16>, vector<16x256xf32> -> vector<16x256xf32>
    %14 = arith.truncf %12 : vector<8x128xf32> to vector<8x128xbf16>
    %15 = arith.truncf %13 : vector<16x256xf32> to vector<16x256xbf16>
    %16 = vector.extract_strided_slice %14 {offsets = [0, 0], sizes = [8, 16], strides = [1, 1]} : vector<8x128xbf16> to vector<8x16xbf16>
    %17 = vector.extract_strided_slice %15 {offsets = [0, 0], sizes = [16, 16], strides = [1, 1]} : vector<16x256xbf16> to vector<16x16xbf16>
    %18 = vector.extract_strided_slice %15 {offsets = [0, 128], sizes = [16, 16], strides = [1, 1]} : vector<16x256xbf16> to vector<16x16xbf16>
    %cst_12 = arith.constant dense<0.000000e+00> : vector<8x16xf32>
    %19 = tpu.matmul %16, %17, %cst_12 {dimension_numbers = #tpu.dot_dimension_numbers<[1], [1], [0], [0], [0, 0, 1, 0], [], []>} : vector<8x16xbf16>, vector<16x16xbf16>, vector<8x16xf32> -> vector<8x16xf32>
    %cst_13 = arith.constant 2.500000e-01 : f32
    %20 = vector.broadcast %cst_13 : f32 to vector<8x16xf32>
    %21 = arith.mulf %19, %20 : vector<8x16xf32>
    %cst_14 = arith.constant dense<0xFF800000> : vector<8xf32>
    %22 = vector.multi_reduction <maximumf>, %21, %cst_14 [1] : vector<8x16xf32> to vector<8xf32>
    %23 = vector.shape_cast %22 : vector<8xf32> to vector<8x1xf32>
    %24 = vector.broadcast %23 : vector<8x1xf32> to vector<8x16xf32>
    %25 = arith.subf %21, %24 : vector<8x16xf32>
    %26 = math.exp %25 : vector<8x16xf32>
    %cst_15 = arith.constant dense<0.000000e+00> : vector<8xf32>
    %27 = vector.multi_reduction <add>, %26, %cst_15 [1] : vector<8x16xf32> to vector<8xf32>
    %28 = vector.shape_cast %27 : vector<8xf32> to vector<8x1xf32>
    %29 = tpu.reciprocal %28 {approx = true} : vector<8x1xf32> -> vector<8x1xf32>
    %30 = vector.broadcast %29 : vector<8x1xf32> to vector<8x16xf32>
    %31 = arith.mulf %26, %30 : vector<8x16xf32>
    %32 = arith.truncf %31 : vector<8x16xf32> to vector<8x16xbf16>
    %cst_16 = arith.constant dense<0.000000e+00> : vector<8x16xf32>
    %33 = tpu.matmul %32, %18, %cst_16 {dimension_numbers = #tpu.dot_dimension_numbers<[1], [0], [0], [1], [0, 0, 1, 1], [], []>} : vector<8x16xbf16>, vector<16x16xbf16>, vector<8x16xf32> -> vector<8x16xf32>
    %34 = vector.extract_strided_slice %14 {offsets = [0, 16], sizes = [8, 16], strides = [1, 1]} : vector<8x128xbf16> to vector<8x16xbf16>
    %35 = vector.extract_strided_slice %15 {offsets = [0, 16], sizes = [16, 16], strides = [1, 1]} : vector<16x256xbf16> to vector<16x16xbf16>
    %36 = vector.extract_strided_slice %15 {offsets = [0, 144], sizes = [16, 16], strides = [1, 1]} : vector<16x256xbf16> to vector<16x16xbf16>
    %cst_17 = arith.constant dense<0.000000e+00> : vector<8x16xf32>
    %37 = tpu.matmul %34, %35, %cst_17 {dimension_numbers = #tpu.dot_dimension_numbers<[1], [1], [0], [0], [0, 0, 1, 0], [], []>} : vector<8x16xbf16>, vector<16x16xbf16>, vector<8x16xf32> -> vector<8x16xf32>
    %cst_18 = arith.constant 2.500000e-01 : f32
    %38 = vector.broadcast %cst_18 : f32 to vector<8x16xf32>
    %39 = arith.mulf %37, %38 : vector<8x16xf32>
    %cst_19 = arith.constant dense<0xFF800000> : vector<8xf32>
    %40 = vector.multi_reduction <maximumf>, %39, %cst_19 [1] : vector<8x16xf32> to vector<8xf32>
    %41 = vector.shape_cast %40 : vector<8xf32> to vector<8x1xf32>
    %42 = vector.broadcast %41 : vector<8x1xf32> to vector<8x16xf32>
    %43 = arith.subf %39, %42 : vector<8x16xf32>
    %44 = math.exp %43 : vector<8x16xf32>
    %cst_20 = arith.constant dense<0.000000e+00> : vector<8xf32>
    %45 = vector.multi_reduction <add>, %44, %cst_20 [1] : vector<8x16xf32> to vector<8xf32>
    %46 = vector.shape_cast %45 : vector<8xf32> to vector<8x1xf32>
    %47 = tpu.reciprocal %46 {approx = true} : vector<8x1xf32> -> vector<8x1xf32>
    %48 = vector.broadcast %47 : vector<8x1xf32> to vector<8x16xf32>
    %49 = arith.mulf %44, %48 : vector<8x16xf32>
    %50 = arith.truncf %49 : vector<8x16xf32> to vector<8x16xbf16>
    %cst_21 = arith.constant dense<0.000000e+00> : vector<8x16xf32>
    %51 = tpu.matmul %50, %36, %cst_21 {dimension_numbers = #tpu.dot_dimension_numbers<[1], [0], [0], [1], [0, 0, 1, 1], [], []>} : vector<8x16xbf16>, vector<16x16xbf16>, vector<8x16xf32> -> vector<8x16xf32>
    %52 = vector.extract_strided_slice %14 {offsets = [0, 32], sizes = [8, 16], strides = [1, 1]} : vector<8x128xbf16> to vector<8x16xbf16>
    %53 = vector.extract_strided_slice %15 {offsets = [0, 32], sizes = [16, 16], strides = [1, 1]} : vector<16x256xbf16> to vector<16x16xbf16>
    %54 = vector.extract_strided_slice %15 {offsets = [0, 160], sizes = [16, 16], strides = [1, 1]} : vector<16x256xbf16> to vector<16x16xbf16>
    %cst_22 = arith.constant dense<0.000000e+00> : vector<8x16xf32>
    %55 = tpu.matmul %52, %53, %cst_22 {dimension_numbers = #tpu.dot_dimension_numbers<[1], [1], [0], [0], [0, 0, 1, 0], [], []>} : vector<8x16xbf16>, vector<16x16xbf16>, vector<8x16xf32> -> vector<8x16xf32>
    %cst_23 = arith.constant 2.500000e-01 : f32
    %56 = vector.broadcast %cst_23 : f32 to vector<8x16xf32>
    %57 = arith.mulf %55, %56 : vector<8x16xf32>
    %cst_24 = arith.constant dense<0xFF800000> : vector<8xf32>
    %58 = vector.multi_reduction <maximumf>, %57, %cst_24 [1] : vector<8x16xf32> to vector<8xf32>
    %59 = vector.shape_cast %58 : vector<8xf32> to vector<8x1xf32>
    %60 = vector.broadcast %59 : vector<8x1xf32> to vector<8x16xf32>
    %61 = arith.subf %57, %60 : vector<8x16xf32>
    %62 = math.exp %61 : vector<8x16xf32>
    %cst_25 = arith.constant dense<0.000000e+00> : vector<8xf32>
    %63 = vector.multi_reduction <add>, %62, %cst_25 [1] : vector<8x16xf32> to vector<8xf32>
    %64 = vector.shape_cast %63 : vector<8xf32> to vector<8x1xf32>
    %65 = tpu.reciprocal %64 {approx = true} : vector<8x1xf32> -> vector<8x1xf32>
    %66 = vector.broadcast %65 : vector<8x1xf32> to vector<8x16xf32>
    %67 = arith.mulf %62, %66 : vector<8x16xf32>
    %68 = arith.truncf %67 : vector<8x16xf32> to vector<8x16xbf16>
    %cst_26 = arith.constant dense<0.000000e+00> : vector<8x16xf32>
    %69 = tpu.matmul %68, %54, %cst_26 {dimension_numbers = #tpu.dot_dimension_numbers<[1], [0], [0], [1], [0, 0, 1, 1], [], []>} : vector<8x16xbf16>, vector<16x16xbf16>, vector<8x16xf32> -> vector<8x16xf32>
    %70 = vector.extract_strided_slice %14 {offsets = [0, 48], sizes = [8, 16], strides = [1, 1]} : vector<8x128xbf16> to vector<8x16xbf16>
    %71 = vector.extract_strided_slice %15 {offsets = [0, 48], sizes = [16, 16], strides = [1, 1]} : vector<16x256xbf16> to vector<16x16xbf16>
    %72 = vector.extract_strided_slice %15 {offsets = [0, 176], sizes = [16, 16], strides = [1, 1]} : vector<16x256xbf16> to vector<16x16xbf16>
    %cst_27 = arith.constant dense<0.000000e+00> : vector<8x16xf32>
    %73 = tpu.matmul %70, %71, %cst_27 {dimension_numbers = #tpu.dot_dimension_numbers<[1], [1], [0], [0], [0, 0, 1, 0], [], []>} : vector<8x16xbf16>, vector<16x16xbf16>, vector<8x16xf32> -> vector<8x16xf32>
    %cst_28 = arith.constant 2.500000e-01 : f32
    %74 = vector.broadcast %cst_28 : f32 to vector<8x16xf32>
    %75 = arith.mulf %73, %74 : vector<8x16xf32>
    %cst_29 = arith.constant dense<0xFF800000> : vector<8xf32>
    %76 = vector.multi_reduction <maximumf>, %75, %cst_29 [1] : vector<8x16xf32> to vector<8xf32>
    %77 = vector.shape_cast %76 : vector<8xf32> to vector<8x1xf32>
    %78 = vector.broadcast %77 : vector<8x1xf32> to vector<8x16xf32>
    %79 = arith.subf %75, %78 : vector<8x16xf32>
    %80 = math.exp %79 : vector<8x16xf32>
    %cst_30 = arith.constant dense<0.000000e+00> : vector<8xf32>
    %81 = vector.multi_reduction <add>, %80, %cst_30 [1] : vector<8x16xf32> to vector<8xf32>
    %82 = vector.shape_cast %81 : vector<8xf32> to vector<8x1xf32>
    %83 = tpu.reciprocal %82 {approx = true} : vector<8x1xf32> -> vector<8x1xf32>
    %84 = vector.broadcast %83 : vector<8x1xf32> to vector<8x16xf32>
    %85 = arith.mulf %80, %84 : vector<8x16xf32>
    %86 = arith.truncf %85 : vector<8x16xf32> to vector<8x16xbf16>
    %cst_31 = arith.constant dense<0.000000e+00> : vector<8x16xf32>
    %87 = tpu.matmul %86, %72, %cst_31 {dimension_numbers = #tpu.dot_dimension_numbers<[1], [0], [0], [1], [0, 0, 1, 1], [], []>} : vector<8x16xbf16>, vector<16x16xbf16>, vector<8x16xf32> -> vector<8x16xf32>
    %88 = vector.extract_strided_slice %14 {offsets = [0, 64], sizes = [8, 16], strides = [1, 1]} : vector<8x128xbf16> to vector<8x16xbf16>
    %89 = vector.extract_strided_slice %15 {offsets = [0, 64], sizes = [16, 16], strides = [1, 1]} : vector<16x256xbf16> to vector<16x16xbf16>
    %90 = vector.extract_strided_slice %15 {offsets = [0, 192], sizes = [16, 16], strides = [1, 1]} : vector<16x256xbf16> to vector<16x16xbf16>
    %cst_32 = arith.constant dense<0.000000e+00> : vector<8x16xf32>
    %91 = tpu.matmul %88, %89, %cst_32 {dimension_numbers = #tpu.dot_dimension_numbers<[1], [1], [0], [0], [0, 0, 1, 0], [], []>} : vector<8x16xbf16>, vector<16x16xbf16>, vector<8x16xf32> -> vector<8x16xf32>
    %cst_33 = arith.constant 2.500000e-01 : f32
    %92 = vector.broadcast %cst_33 : f32 to vector<8x16xf32>
    %93 = arith.mulf %91, %92 : vector<8x16xf32>
    %cst_34 = arith.constant dense<0xFF800000> : vector<8xf32>
    %94 = vector.multi_reduction <maximumf>, %93, %cst_34 [1] : vector<8x16xf32> to vector<8xf32>
    %95 = vector.shape_cast %94 : vector<8xf32> to vector<8x1xf32>
    %96 = vector.broadcast %95 : vector<8x1xf32> to vector<8x16xf32>
    %97 = arith.subf %93, %96 : vector<8x16xf32>
    %98 = math.exp %97 : vector<8x16xf32>
    %cst_35 = arith.constant dense<0.000000e+00> : vector<8xf32>
    %99 = vector.multi_reduction <add>, %98, %cst_35 [1] : vector<8x16xf32> to vector<8xf32>
    %100 = vector.shape_cast %99 : vector<8xf32> to vector<8x1xf32>
    %101 = tpu.reciprocal %100 {approx = true} : vector<8x1xf32> -> vector<8x1xf32>
    %102 = vector.broadcast %101 : vector<8x1xf32> to vector<8x16xf32>
    %103 = arith.mulf %98, %102 : vector<8x16xf32>
    %104 = arith.truncf %103 : vector<8x16xf32> to vector<8x16xbf16>
    %cst_36 = arith.constant dense<0.000000e+00> : vector<8x16xf32>
    %105 = tpu.matmul %104, %90, %cst_36 {dimension_numbers = #tpu.dot_dimension_numbers<[1], [0], [0], [1], [0, 0, 1, 1], [], []>} : vector<8x16xbf16>, vector<16x16xbf16>, vector<8x16xf32> -> vector<8x16xf32>
    %106 = vector.extract_strided_slice %14 {offsets = [0, 80], sizes = [8, 16], strides = [1, 1]} : vector<8x128xbf16> to vector<8x16xbf16>
    %107 = vector.extract_strided_slice %15 {offsets = [0, 80], sizes = [16, 16], strides = [1, 1]} : vector<16x256xbf16> to vector<16x16xbf16>
    %108 = vector.extract_strided_slice %15 {offsets = [0, 208], sizes = [16, 16], strides = [1, 1]} : vector<16x256xbf16> to vector<16x16xbf16>
    %cst_37 = arith.constant dense<0.000000e+00> : vector<8x16xf32>
    %109 = tpu.matmul %106, %107, %cst_37 {dimension_numbers = #tpu.dot_dimension_numbers<[1], [1], [0], [0], [0, 0, 1, 0], [], []>} : vector<8x16xbf16>, vector<16x16xbf16>, vector<8x16xf32> -> vector<8x16xf32>
    %cst_38 = arith.constant 2.500000e-01 : f32
    %110 = vector.broadcast %cst_38 : f32 to vector<8x16xf32>
    %111 = arith.mulf %109, %110 : vector<8x16xf32>
    %cst_39 = arith.constant dense<0xFF800000> : vector<8xf32>
    %112 = vector.multi_reduction <maximumf>, %111, %cst_39 [1] : vector<8x16xf32> to vector<8xf32>
    %113 = vector.shape_cast %112 : vector<8xf32> to vector<8x1xf32>
    %114 = vector.broadcast %113 : vector<8x1xf32> to vector<8x16xf32>
    %115 = arith.subf %111, %114 : vector<8x16xf32>
    %116 = math.exp %115 : vector<8x16xf32>
    %cst_40 = arith.constant dense<0.000000e+00> : vector<8xf32>
    %117 = vector.multi_reduction <add>, %116, %cst_40 [1] : vector<8x16xf32> to vector<8xf32>
    %118 = vector.shape_cast %117 : vector<8xf32> to vector<8x1xf32>
    %119 = tpu.reciprocal %118 {approx = true} : vector<8x1xf32> -> vector<8x1xf32>
    %120 = vector.broadcast %119 : vector<8x1xf32> to vector<8x16xf32>
    %121 = arith.mulf %116, %120 : vector<8x16xf32>
    %122 = arith.truncf %121 : vector<8x16xf32> to vector<8x16xbf16>
    %cst_41 = arith.constant dense<0.000000e+00> : vector<8x16xf32>
    %123 = tpu.matmul %122, %108, %cst_41 {dimension_numbers = #tpu.dot_dimension_numbers<[1], [0], [0], [1], [0, 0, 1, 1], [], []>} : vector<8x16xbf16>, vector<16x16xbf16>, vector<8x16xf32> -> vector<8x16xf32>
    %124 = vector.extract_strided_slice %14 {offsets = [0, 96], sizes = [8, 16], strides = [1, 1]} : vector<8x128xbf16> to vector<8x16xbf16>
    %125 = vector.extract_strided_slice %15 {offsets = [0, 96], sizes = [16, 16], strides = [1, 1]} : vector<16x256xbf16> to vector<16x16xbf16>
    %126 = vector.extract_strided_slice %15 {offsets = [0, 224], sizes = [16, 16], strides = [1, 1]} : vector<16x256xbf16> to vector<16x16xbf16>
    %cst_42 = arith.constant dense<0.000000e+00> : vector<8x16xf32>
    %127 = tpu.matmul %124, %125, %cst_42 {dimension_numbers = #tpu.dot_dimension_numbers<[1], [1], [0], [0], [0, 0, 1, 0], [], []>} : vector<8x16xbf16>, vector<16x16xbf16>, vector<8x16xf32> -> vector<8x16xf32>
    %cst_43 = arith.constant 2.500000e-01 : f32
    %128 = vector.broadcast %cst_43 : f32 to vector<8x16xf32>
    %129 = arith.mulf %127, %128 : vector<8x16xf32>
    %cst_44 = arith.constant dense<0xFF800000> : vector<8xf32>
    %130 = vector.multi_reduction <maximumf>, %129, %cst_44 [1] : vector<8x16xf32> to vector<8xf32>
    %131 = vector.shape_cast %130 : vector<8xf32> to vector<8x1xf32>
    %132 = vector.broadcast %131 : vector<8x1xf32> to vector<8x16xf32>
    %133 = arith.subf %129, %132 : vector<8x16xf32>
    %134 = math.exp %133 : vector<8x16xf32>
    %cst_45 = arith.constant dense<0.000000e+00> : vector<8xf32>
    %135 = vector.multi_reduction <add>, %134, %cst_45 [1] : vector<8x16xf32> to vector<8xf32>
    %136 = vector.shape_cast %135 : vector<8xf32> to vector<8x1xf32>
    %137 = tpu.reciprocal %136 {approx = true} : vector<8x1xf32> -> vector<8x1xf32>
    %138 = vector.broadcast %137 : vector<8x1xf32> to vector<8x16xf32>
    %139 = arith.mulf %134, %138 : vector<8x16xf32>
    %140 = arith.truncf %139 : vector<8x16xf32> to vector<8x16xbf16>
    %cst_46 = arith.constant dense<0.000000e+00> : vector<8x16xf32>
    %141 = tpu.matmul %140, %126, %cst_46 {dimension_numbers = #tpu.dot_dimension_numbers<[1], [0], [0], [1], [0, 0, 1, 1], [], []>} : vector<8x16xbf16>, vector<16x16xbf16>, vector<8x16xf32> -> vector<8x16xf32>
    %142 = vector.extract_strided_slice %14 {offsets = [0, 112], sizes = [8, 16], strides = [1, 1]} : vector<8x128xbf16> to vector<8x16xbf16>
    %143 = vector.extract_strided_slice %15 {offsets = [0, 112], sizes = [16, 16], strides = [1, 1]} : vector<16x256xbf16> to vector<16x16xbf16>
    %144 = vector.extract_strided_slice %15 {offsets = [0, 240], sizes = [16, 16], strides = [1, 1]} : vector<16x256xbf16> to vector<16x16xbf16>
    %cst_47 = arith.constant dense<0.000000e+00> : vector<8x16xf32>
    %145 = tpu.matmul %142, %143, %cst_47 {dimension_numbers = #tpu.dot_dimension_numbers<[1], [1], [0], [0], [0, 0, 1, 0], [], []>} : vector<8x16xbf16>, vector<16x16xbf16>, vector<8x16xf32> -> vector<8x16xf32>
    %cst_48 = arith.constant 2.500000e-01 : f32
    %146 = vector.broadcast %cst_48 : f32 to vector<8x16xf32>
    %147 = arith.mulf %145, %146 : vector<8x16xf32>
    %cst_49 = arith.constant dense<0xFF800000> : vector<8xf32>
    %148 = vector.multi_reduction <maximumf>, %147, %cst_49 [1] : vector<8x16xf32> to vector<8xf32>
    %149 = vector.shape_cast %148 : vector<8xf32> to vector<8x1xf32>
    %150 = vector.broadcast %149 : vector<8x1xf32> to vector<8x16xf32>
    %151 = arith.subf %147, %150 : vector<8x16xf32>
    %152 = math.exp %151 : vector<8x16xf32>
    %cst_50 = arith.constant dense<0.000000e+00> : vector<8xf32>
    %153 = vector.multi_reduction <add>, %152, %cst_50 [1] : vector<8x16xf32> to vector<8xf32>
    %154 = vector.shape_cast %153 : vector<8xf32> to vector<8x1xf32>
    %155 = tpu.reciprocal %154 {approx = true} : vector<8x1xf32> -> vector<8x1xf32>
    %156 = vector.broadcast %155 : vector<8x1xf32> to vector<8x16xf32>
    %157 = arith.mulf %152, %156 : vector<8x16xf32>
    %158 = arith.truncf %157 : vector<8x16xf32> to vector<8x16xbf16>
    %cst_51 = arith.constant dense<0.000000e+00> : vector<8x16xf32>
    %159 = tpu.matmul %158, %144, %cst_51 {dimension_numbers = #tpu.dot_dimension_numbers<[1], [0], [0], [1], [0, 0, 1, 1], [], []>} : vector<8x16xbf16>, vector<16x16xbf16>, vector<8x16xf32> -> vector<8x16xf32>
    %160 = tpu.concatenate %33, %51, %69, %87, %105, %123, %141, %159 in 1 : vector<8x16xf32>, vector<8x16xf32>, vector<8x16xf32>, vector<8x16xf32>, vector<8x16xf32>, vector<8x16xf32>, vector<8x16xf32>, vector<8x16xf32> -> vector<8x128xf32>
    %161 = arith.truncf %160 : vector<8x128xf32> to vector<8x128xbf16>
    %cst_52 = arith.constant dense<0.000000e+00> : vector<8x32xf32>
    %162 = tpu.matmul %161, %11, %cst_52 {dimension_numbers = #tpu.dot_dimension_numbers<[1], [0], [0], [1], [0, 0, 1, 1], [], []>} : vector<8x128xbf16>, vector<128x32xbf16>, vector<8x32xf32> -> vector<8x32xf32>
    %c0_53 = arith.constant 0 : index
    %c0_54 = arith.constant 0 : index
    %163 = vector.load %arg7[%c0_53, %c0_54] : memref<1x32xf32, #tpu.memory_space<vmem>>, vector<1x32xf32>
    %164 = vector.broadcast %163 : vector<1x32xf32> to vector<8x32xf32>
    %165 = arith.addf %162, %164 : vector<8x32xf32>
    %c0_55 = arith.constant 0 : index
    %c0_56 = arith.constant 0 : index
    %c0_57 = arith.constant 0 : index
    %166 = vector.load %arg8[%c0_55, %c0_56, %c0_57] : memref<1x8x32xf32, #tpu.memory_space<vmem>>, vector<1x8x32xf32>
    %167 = vector.shape_cast %166 : vector<1x8x32xf32> to vector<8x32xf32>
    %168 = vector.shape_cast %165 : vector<8x32xf32> to vector<1x8x32xf32>
    tpu.vector_store %arg8[%c0_55, %c0_56, %c0_57], %168 {strides = array<i32>} : memref<1x8x32xf32, #tpu.memory_space<vmem>>, vector<1x8x32xf32>,
    return
  }
  func.func @transform_0(%arg0: i32, %arg1: i32) -> (i32, i32, i32) {
    %c0_i32 = arith.constant 0 : i32
    %c0_i32_0 = arith.constant 0 : i32
    return %arg0, %arg1, %c0_i32 : i32, i32, i32
  }
  func.func @transform_1(%arg0: i32, %arg1: i32) -> (i32, i32, i32) {
    %c0_i32 = arith.constant 0 : i32
    %c0_i32_0 = arith.constant 0 : i32
    %c0_i32_1 = arith.constant 0 : i32
    return %arg0, %c0_i32, %c0_i32_0 : i32, i32, i32
  }
  func.func @transform_2(%arg0: i32, %arg1: i32) -> (i32, i32) {
    %c0_i32 = arith.constant 0 : i32
    %c0_i32_0 = arith.constant 0 : i32
    %c0_i32_1 = arith.constant 0 : i32
    return %c0_i32, %c0_i32_0 : i32, i32
  }
  func.func @transform_3(%arg0: i32, %arg1: i32) -> (i32, i32) {
    %c0_i32 = arith.constant 0 : i32
    %c0_i32_0 = arith.constant 0 : i32
    %c0_i32_1 = arith.constant 0 : i32
    return %c0_i32, %c0_i32_0 : i32, i32
  }
  func.func @transform_4(%arg0: i32, %arg1: i32) -> (i32, i32) {
    %c0_i32 = arith.constant 0 : i32
    %c0_i32_0 = arith.constant 0 : i32
    %c0_i32_1 = arith.constant 0 : i32
    return %c0_i32, %c0_i32_0 : i32, i32
  }
  func.func @transform_5(%arg0: i32, %arg1: i32) -> (i32, i32) {
    %c0_i32 = arith.constant 0 : i32
    %c0_i32_0 = arith.constant 0 : i32
    %c0_i32_1 = arith.constant 0 : i32
    return %c0_i32, %c0_i32_0 : i32, i32
  }
  func.func @transform_6(%arg0: i32, %arg1: i32) -> (i32, i32, i32) {
    %c0_i32 = arith.constant 0 : i32
    %c0_i32_0 = arith.constant 0 : i32
    return %arg0, %arg1, %c0_i32 : i32, i32, i32
  }
}

</mosaic_0001>

<llo_original>
// kernel: cross_self_transformer.1
$region0: #{cross_self_transformer.1}
  #allocation0 [shape = 'u32[]', space=smem, size = 0x4, offset = 0x4, fixed_abs, tag = 'smem constant byte address 0x4 - core index']
  #allocation1 [shape = 'u32[144,128]{1,0:T(1,128)}', space=vmem, size = 0x12000, scoped, tag = 'internal scratch']
  %s0 = inlined_call_operand.vmem [shape: f32[2,8,32], index: 0, kind: input, shape index: {}]
  %s1 = inlined_call_operand.vmem [shape: f32[2,16,16], index: 1, kind: input, shape index: {}]
  %s2 = inlined_call_operand.vmem [shape: f32[32,128], index: 2, kind: input, shape index: {}]
  %s3 = inlined_call_operand.vmem [shape: f32[16,256], index: 3, kind: input, shape index: {}]
  %s4 = inlined_call_operand.vmem [shape: f32[128,32], index: 4, kind: input, shape index: {}]
  %s5 = inlined_call_operand.vmem [shape: f32[1,32], index: 5, kind: input, shape index: {}]
  %s6 = inlined_call_operand.hbm [shape: f32[2,8,32], index: 6, kind: output, shape index: {}]
  %s7 = sld [smem:[#allocation0]]
  $region57: #{cross_self_transformer.1} parent=0
    _
  %s9 = ssub.s32 1, %s7
  %s10 = scalar_select 0, %s9, %s7
  $region1: #{cross_self_transformer.1} parent=0
    #allocation2 [shape = 'u8[8192]{0}', space=vmem, size = 0x2000, scoped, tag = 'output window, operand 0']
    #allocation3 [shape = 's32[2]{0}', space=sflag, size = 0x8, scoped, tag = 'scoped memory for cross_self_transformer.1']
    %11 = vsyncpa [#allocation3], 0
    %s12 = scalar_lea.sflag [#allocation3], 1
    %13 = vsyncpa %s12, 0
    loop: start=0, step=1, limit=4
    $region2: #{cross_self_transformer.1} parent=1 // loop_pre_header
      _
    $region3: #{cross_self_transformer.1} parent=1 // loop_header
      %s15 = sphi 0, %s19
      %p16 = scmp.ge.s32.totalorder %s15, 4
      %s22 = sphi 0, %s34
      %s23 = sphi 0, %s30
      %s24 = sphi 0, %s22
      %s25 = sphi 0, %s23
      %s26 = sphi 0, %s24
      %s27 = sphi 0, %s25
      %s39 = sphi 0, %s41
      %s42 = sphi 0, %s39
      %s43 = sphi 0, %s42
      %s59 = sphi 0, %s43
      %s65 = sphi 0, %s67
      %s68 = sphi 0, %s65
      %s69 = sphi 0, %s68
      %s85 = sphi 0, %s69
      %s89 = sphi 0, %s89
      %s91 = sphi 0, %s89
      %s92 = sphi 0, %s91
      %s106 = sphi 0, %s92
      %s110 = sphi 0, %s110
      %s112 = sphi 0, %s110
      %s113 = sphi 0, %s112
      %s127 = sphi 0, %s113
      %s131 = sphi 0, %s131
      %s133 = sphi 0, %s131
      %s134 = sphi 0, %s133
      %s148 = sphi 0, %s134
      %s152 = sphi 0, %s152
      %s154 = sphi 0, %s152
      %s155 = sphi 0, %s154
      %s169 = sphi 0, %s155
      %s177 = sphi 0, %s179
      %s180 = sphi 0, %s177
      %s181 = sphi 0, %s180
      %s197 = sphi 0, %s181
    $region4: #{cross_self_transformer.1} parent=1 // loop_header_branch
      %18 = sbr.rel (%p16) target = $region8
    $region5: #{cross_self_transformer.1} parent=1 // loop_body
      %s20 = ssub.s32 %s15, 1
      %s21 = ssub.s32 %s15, 2
      %s28 = sadd.s32 1, %s23
      %p29 = scmp.ge.s32.totalorder %s28, 1
      %s30 = scalar_select %p29, 0, %s28
      %s31 = sadd.s32 1, %s22
      %s32 = scalar_select %p29, %s31, %s22
      %p33 = scmp.ge.s32.totalorder %s32, 2
      %s34 = scalar_select %p33, 0, %s32
      %s35 = ssub.s32 %s22, %s34
      %s36 = ssub.s32 %s23, %s30
      %s37 = sor.u32 %s35, %s36
      %p38 = scmp.eq.s32.totalorder %s37, 0
      %s40 = sadd.s32 %s39, 1
      %s41 = scalar_select %p38, %s39, %s40
      %p44 = pneg %p38
      %p45 = scmp.eq.s32.totalorder %s15, 1
      %p46 = por %p44, %p45
      %p47 = scmp.ne.s32.totalorder %s39, %s42
      %p48 = scmp.eq.s32.totalorder %s15, 0
      %p49 = por %p47, %p48
      %p50 = scmp.ne.s32.totalorder %s39, %s42
      %p51 = scmp.eq.s32.totalorder %s20, 1
      %p52 = por %p50, %p51
      %p53 = scmp.ne.s32.totalorder %s42, %s43
      %p54 = scmp.eq.s32.totalorder %s20, 0
      %p55 = por %p53, %p54
      %p56 = scmp.ne.s32.totalorder %s42, %s43
      %p57 = scmp.eq.s32.totalorder %s21, 1
      %p58 = por %p56, %p57
      %p60 = scmp.ne.s32.totalorder %s43, %s59
      %p61 = scmp.eq.s32.totalorder %s21, 0
      %p62 = por %p60, %p61
      %s63 = ssub.s32 %s22, %s34
      %p64 = scmp.eq.s32.totalorder %s63, 0
      %s66 = sadd.s32 %s65, 1
      %s67 = scalar_select %p64, %s65, %s66
      %p70 = pneg %p64
      %p71 = scmp.eq.s32.totalorder %s15, 1
      %p72 = por %p70, %p71
      %p73 = scmp.ne.s32.totalorder %s65, %s68
      %p74 = scmp.eq.s32.totalorder %s15, 0
      %p75 = por %p73, %p74
      %p76 = scmp.ne.s32.totalorder %s65, %s68
      %p77 = scmp.eq.s32.totalorder %s20, 1
      %p78 = por %p76, %p77
      %p79 = scmp.ne.s32.totalorder %s68, %s69
      %p80 = scmp.eq.s32.totalorder %s20, 0
      %p81 = por %p79, %p80
      %p82 = scmp.ne.s32.totalorder %s68, %s69
      %p83 = scmp.eq.s32.totalorder %s21, 1
      %p84 = por %p82, %p83
      %p86 = scmp.ne.s32.totalorder %s69, %s85
      %p87 = scmp.eq.s32.totalorder %s21, 0
      %p88 = por %p86, %p87
      %s90 = sadd.s32 %s89, 1
      %p93 = scmp.eq.s32.totalorder %s15, 1
      %p94 = scmp.ne.s32.totalorder %s89, %s91
      %p95 = scmp.eq.s32.totalorder %s15, 0
      %p96 = por %p94, %p95
      %p97 = scmp.ne.s32.totalorder %s89, %s91
      %p98 = scmp.eq.s32.totalorder %s20, 1
      %p99 = por %p97, %p98
      %p100 = scmp.ne.s32.totalorder %s91, %s92
      %p101 = scmp.eq.s32.totalorder %s20, 0
      %p102 = por %p100, %p101
      %p103 = scmp.ne.s32.totalorder %s91, %s92
      %p104 = scmp.eq.s32.totalorder %s21, 1
      %p105 = por %p103, %p104
      %p107 = scmp.ne.s32.totalorder %s92, %s106
      %p108 = scmp.eq.s32.totalorder %s21, 0
      %p109 = por %p107, %p108
      %s111 = sadd.s32 %s110, 1
      %p114 = scmp.eq.s32.totalorder %s15, 1
      %p115 = scmp.ne.s32.totalorder %s110, %s112
      %p116 = scmp.eq.s32.totalorder %s15, 0
      %p117 = por %p115, %p116
      %p118 = scmp.ne.s32.totalorder %s110, %s112
      %p119 = scmp.eq.s32.totalorder %s20, 1
      %p120 = por %p118, %p119
      %p121 = scmp.ne.s32.totalorder %s112, %s113
      %p122 = scmp.eq.s32.totalorder %s20, 0
      %p123 = por %p121, %p122
      %p124 = scmp.ne.s32.totalorder %s112, %s113
      %p125 = scmp.eq.s32.totalorder %s21, 1
      %p126 = por %p124, %p125
      %p128 = scmp.ne.s32.totalorder %s113, %s127
      %p129 = scmp.eq.s32.totalorder %s21, 0
      %p130 = por %p128, %p129
      %s132 = sadd.s32 %s131, 1
      %p135 = scmp.eq.s32.totalorder %s15, 1
      %p136 = scmp.ne.s32.totalorder %s131, %s133
      %p137 = scmp.eq.s32.totalorder %s15, 0
      %p138 = por %p136, %p137
      %p139 = scmp.ne.s32.totalorder %s131, %s133
      %p140 = scmp.eq.s32.totalorder %s20, 1
      %p141 = por %p139, %p140
      %p142 = scmp.ne.s32.totalorder %s133, %s134
      %p143 = scmp.eq.s32.totalorder %s20, 0
      %p144 = por %p142, %p143
      %p145 = scmp.ne.s32.totalorder %s133, %s134
      %p146 = scmp.eq.s32.totalorder %s21, 1
      %p147 = por %p145, %p146
      %p149 = scmp.ne.s32.totalorder %s134, %s148
      %p150 = scmp.eq.s32.totalorder %s21, 0
      %p151 = por %p149, %p150
      %s153 = sadd.s32 %s152, 1
      %p156 = scmp.eq.s32.totalorder %s15, 1
      %p157 = scmp.ne.s32.totalorder %s152, %s154
      %p158 = scmp.eq.s32.totalorder %s15, 0
      %p159 = por %p157, %p158
      %p160 = scmp.ne.s32.totalorder %s152, %s154
      %p161 = scmp.eq.s32.totalorder %s20, 1
      %p162 = por %p160, %p161
      %p163 = scmp.ne.s32.totalorder %s154, %s155
      %p164 = scmp.eq.s32.totalorder %s20, 0
      %p165 = por %p163, %p164
      %p166 = scmp.ne.s32.totalorder %s154, %s155
      %p167 = scmp.eq.s32.totalorder %s21, 1
      %p168 = por %p166, %p167
      %p170 = scmp.ne.s32.totalorder %s155, %s169
      %p171 = scmp.eq.s32.totalorder %s21, 0
      %p172 = por %p170, %p171
      %s173 = ssub.s32 %s22, %s34
      %s174 = ssub.s32 %s23, %s30
      %s175 = sor.u32 %s173, %s174
      %p176 = scmp.eq.s32.totalorder %s175, 0
      %s178 = sadd.s32 %s177, 1
      %s179 = scalar_select %p176, %s177, %s178
      %p182 = pneg %p176
      %p183 = scmp.eq.s32.totalorder %s15, 1
      %p184 = por %p182, %p183
      %p185 = scmp.ne.s32.totalorder %s177, %s180
      %p186 = scmp.eq.s32.totalorder %s15, 0
      %p187 = por %p185, %p186
      %p188 = scmp.ne.s32.totalorder %s177, %s180
      %p189 = scmp.eq.s32.totalorder %s20, 1
      %p190 = por %p188, %p189
      %p191 = scmp.ne.s32.totalorder %s180, %s181
      %p192 = scmp.eq.s32.totalorder %s20, 0
      %p193 = por %p191, %p192
      %p194 = scmp.ne.s32.totalorder %s180, %s181
      %p195 = scmp.eq.s32.totalorder %s21, 1
      %p196 = por %p194, %p195
      %p198 = scmp.ne.s32.totalorder %s181, %s197
      %p199 = scmp.eq.s32.totalorder %s21, 0
      %p200 = por %p198, %p199
      %p201 = scmp.le.s32.totalorder 1, %s15
      %p202 = scmp.lt.s32.totalorder %s15, 3
      %p203 = pnand %p201, %p202
      %p204 = pneg %p203
      // Predicated region
      $region9: #{cross_self_transformer.1} parent=5 // pred_check
        _
      $region10: #{cross_self_transformer.1} parent=5 // pred_check_branch
        %206 = sbr.rel (%p203) target = $region12
      $region11: #{cross_self_transformer.1} parent=5 // pred_region
        %s207 = ssub.s32 %s15, 1
        // Predicated region
        $region13: #{cross_self_transformer.1} parent=11 // pred_check
          %p208 = pneg %p102
        $region14: #{cross_self_transformer.1} parent=11 // pred_check_branch
          %210 = sbr.rel (%p208) target = $region16
        $region15: #{cross_self_transformer.1} parent=11 // pred_region
          _
        $region16: #{cross_self_transformer.1} parent=11 // pred_fallthru
          _
        // Predicated region
        $region17: #{cross_self_transformer.1} parent=11 // pred_check
          %p211 = pneg %p123
        $region18: #{cross_self_transformer.1} parent=11 // pred_check_branch
          %213 = sbr.rel (%p211) target = $region20
        $region19: #{cross_self_transformer.1} parent=11 // pred_region
          _
        $region20: #{cross_self_transformer.1} parent=11 // pred_fallthru
          _
        // Predicated region
        $region21: #{cross_self_transformer.1} parent=11 // pred_check
          %p214 = pneg %p144
        $region22: #{cross_self_transformer.1} parent=11 // pred_check_branch
          %216 = sbr.rel (%p214) target = $region24
        $region23: #{cross_self_transformer.1} parent=11 // pred_region
          _
        $region24: #{cross_self_transformer.1} parent=11 // pred_fallthru
          _
        // Predicated region
        $region25: #{cross_self_transformer.1} parent=11 // pred_check
          %p217 = pneg %p165
        $region26: #{cross_self_transformer.1} parent=11 // pred_check_branch
          %219 = sbr.rel (%p217) target = $region28
        $region27: #{cross_self_transformer.1} parent=11 // pred_region
          _
        $region28: #{cross_self_transformer.1} parent=11 // pred_fallthru
          _
      $region12: #{cross_self_transformer.1} parent=5 // pred_fallthru
        _
      %p220 = scmp.lt.s32.totalorder %s15, 2
      // Predicated region
      $region29: #{cross_self_transformer.1} parent=5 // pred_check
        %p221 = pneg %p220
      $region30: #{cross_self_transformer.1} parent=5 // pred_check_branch
        %223 = sbr.rel (%p221) target = $region32
      $region31: #{cross_self_transformer.1} parent=5 // pred_region
        // Predicated region
        $region33: #{cross_self_transformer.1} parent=31 // pred_check
          %p224 = pneg %p49
        $region34: #{cross_self_transformer.1} parent=31 // pred_check_branch
          %226 = sbr.rel (%p224) target = $region36
        $region35: #{cross_self_transformer.1} parent=31 // pred_region
          %p227 = scmp.lt.s32.totalorder %s22, 1
          %s228 = scalar_select %p227, %s22, 1
          %p229 = scmp.lt.s32.totalorder %s23, 0
          %s230 = scalar_select %p229, %s23, 0
          %s231 = sadd.s32 %s230, %s228
          %s232 = smul.addr %s231, 8
          %s233 = scalar_lea.vmem %s0, %s232
        $region36: #{cross_self_transformer.1} parent=31 // pred_fallthru
          _
        // Predicated region
        $region37: #{cross_self_transformer.1} parent=31 // pred_check
          %p234 = pneg %p75
        $region38: #{cross_self_transformer.1} parent=31 // pred_check_branch
          %236 = sbr.rel (%p234) target = $region40
        $region39: #{cross_self_transformer.1} parent=31 // pred_region
          %p237 = scmp.lt.s32.totalorder %s22, 1
          %s238 = scalar_select %p237, %s22, 1
          %s239 = smul.addr %s238, 2
          %s240 = smul.addr %s239, 8
          %s241 = scalar_lea.vmem %s1, %s240
        $region40: #{cross_self_transformer.1} parent=31 // pred_fallthru
          _
      $region32: #{cross_self_transformer.1} parent=5 // pred_fallthru
        _
      %p242 = scmp.le.s32.totalorder 1, %s15
      %p243 = scmp.lt.s32.totalorder %s15, 3
      %p244 = pnand %p242, %p243
      %p245 = pneg %p244
      // Predicated region
      $region41: #{cross_self_transformer.1} parent=5 // pred_check
        _
      $region42: #{cross_self_transformer.1} parent=5 // pred_check_branch
        %247 = sbr.rel (%p244) target = $region44
      $region43: #{cross_self_transformer.1} parent=5 // pred_region
        %s248 = ssub.s32 %s15, 1
        %p249 = scmp.lt.s32.totalorder %s24, 1
        %s250 = scalar_select %p249, %s24, 1
        %p251 = scmp.lt.s32.totalorder %s25, 0
        %s252 = scalar_select %p251, %s25, 0
        %s253 = sadd.s32 %s252, %s250
        %s254 = smul.addr %s253, 8
        %s255 = scalar_lea.vmem %s0, %s254
        %p256 = pneg %p55
        %p257 = pneg %p52
        %p258 = scmp.lt.s32.totalorder %s24, 1
        %s259 = scalar_select %p258, %s24, 1
        %s260 = smul.addr %s259, 2
        %s261 = smul.addr %s260, 8
        %s262 = scalar_lea.vmem %s1, %s261
        %p263 = pneg %p81
        %p264 = pneg %p78
        %p265 = pneg %p102
        %p266 = pneg %p99
        %p267 = pneg %p123
        %p268 = pneg %p120
        %p269 = pneg %p144
        %p270 = pneg %p141
        %p271 = pneg %p165
        %p272 = pneg %p162
        %p273 = pneg %p193
        %p274 = pneg %p190
        %s275 = sand.u32 %s180, 1
        %s276 = scalar_lea.sflag [#allocation3], %s275
        %s277 = sand.u32 %s180, 1
        %s278 = smul.addr %s277, 8
        %s279 = scalar_lea.vmem [#allocation2], %s278
        %p280 = scmp.lt.s32.totalorder %s24, 1
        %s281 = scalar_select %p280, %s24, 1
        %p282 = scmp.lt.s32.totalorder %s25, 0
        %s283 = scalar_select %p282, %s25, 0
        %s284 = sadd.s32 %s283, %s281
        %s285 = smul.addr %s284, 8
        %s286 = scalar_lea.vmem %s0, %s285
        %p287 = scmp.lt.s32.totalorder %s24, 1
        %s288 = scalar_select %p287, %s24, 1
        %s289 = smul.addr %s288, 2
        %s290 = smul.addr %s289, 8
        %s291 = scalar_lea.vmem %s1, %s290
        %v293 = vld [vmem:[%s286] sm:$0xff]
        %v294 = vpack.c.bf16 %v293, %v293
        %v295 = vld [vmem:[%s291] sm:$0xff]
        %v296 = vld [vmem:[%s291 + $0x8] sm:$0xff]
        %v297 = vpack.c.bf16 %v296, %v295
        %v298 = vld [vmem:[%s2] sm:$0xff]
        %v299 = vld [vmem:[%s2 + $0x8] sm:$0xff]
        %v300 = vld [vmem:[%s2 + $0x10] sm:$0xff]
        %v301 = vld [vmem:[%s2 + $0x18] sm:$0xff]
        %v302 = vpack.c.bf16 %v299, %v298
        %v303 = vpack.c.bf16 %v301, %v300
        %v304 = vld [vmem:[%s3] sm:$0xff]
        %v305 = vld [vmem:[%s3 + $0x8] sm:$0xff]
        %v306 = vld [vmem:[%s3 + $0x10] sm:$0xff]
        %v307 = vld [vmem:[%s3 + $0x18] sm:$0xff]
        %v308 = vpack.c.bf16 %v306, %v304
        %v309 = vpack.c.bf16 %v307, %v305
        %v310 = vld [vmem:[%s4] sm:$0xff]
        %v311 = vld [vmem:[%s4 + $0x8] sm:$0xff]
        %v312 = vld [vmem:[%s4 + $0x10] sm:$0xff]
        %v313 = vld [vmem:[%s4 + $0x18] sm:$0xff]
        %v314 = vld [vmem:[%s4 + $0x20] sm:$0xff]
        %v315 = vld [vmem:[%s4 + $0x28] sm:$0xff]
        %v316 = vld [vmem:[%s4 + $0x30] sm:$0xff]
        %v317 = vld [vmem:[%s4 + $0x38] sm:$0xff]
        %v318 = vld [vmem:[%s4 + $0x40] sm:$0xff]
        %v319 = vld [vmem:[%s4 + $0x48] sm:$0xff]
        %v320 = vld [vmem:[%s4 + $0x50] sm:$0xff]
        %v321 = vld [vmem:[%s4 + $0x58] sm:$0xff]
        %v322 = vld [vmem:[%s4 + $0x60] sm:$0xff]
        %v323 = vld [vmem:[%s4 + $0x68] sm:$0xff]
        %v324 = vld [vmem:[%s4 + $0x70] sm:$0xff]
        %v325 = vld [vmem:[%s4 + $0x78] sm:$0xff]
        %v326 = vpack.c.bf16 %v311, %v310
        %v327 = vpack.c.bf16 %v313, %v312
        %v328 = vpack.c.bf16 %v315, %v314
        %v329 = vpack.c.bf16 %v317, %v316
        %v330 = vpack.c.bf16 %v319, %v318
        %v331 = vpack.c.bf16 %v321, %v320
        %v332 = vpack.c.bf16 %v323, %v322
        %v333 = vpack.c.bf16 %v325, %v324
        %vm334 = vcmask 261120
        %v336 = vsel %vm334, %v294, 0
        %338 = vmatprep.subr.bf16.mxu0 0
        %339 = vmatpush1.bf16.msra.mxu0 0
        %340 = vmatprep.subr.bf16.mxu0 0
        %341 = vmatpush1.bf16.msra.mxu0 0
        %342 = vmatprep.subr.bf16.mxu0 0
        %343 = vmatpush1.bf16.msra.mxu0 0
        %344 = vmatprep.subr.bf16.mxu0 0
        %345 = vmatpush1.bf16.msra.mxu0 0
        %346 = vmatprep.subr.bf16.mxu0 0
        %347 = vmatpush1.bf16.msra.mxu0 0
        %348 = vmatprep.subr.bf16.mxu0 0
        %349 = vmatpush1.bf16.msra.mxu0 0
        %350 = vmatprep.subr.bf16.mxu0 0
        %351 = vmatpush1.bf16.msra.mxu0 %v303
        %352 = vmatprep.subr.bf16.mxu0 0
        %353 = vmatpush1.bf16.msra.mxu0 %v302
        %354 = vmatprep.subr.bf16.mxu0 0
        %355 = vmatpush2.bf16.msra.mxu0 0
        %356 = vmatprep.subr.bf16.mxu0 0
        %357 = vmatpush2.bf16.msra.mxu0 0
        %358 = vmatprep.subr.bf16.mxu0 0
        %359 = vmatpush2.bf16.msra.mxu0 0
        %360 = vmatprep.subr.bf16.mxu0 0
        %361 = vmatpush2.bf16.msra.mxu0 0
        %362 = vmatprep.subr.bf16.mxu0 0
        %363 = vmatpush2.bf16.msra.mxu0 0
        %364 = vmatprep.subr.bf16.mxu0 0
        %365 = vmatpush2.bf16.msra.mxu0 0
        %366 = vmatprep.subr.bf16.mxu0 0
        %367 = vmatpush2.bf16.msra.mxu0 0
        %368 = vmatprep.subr.bf16.mxu0 0
        %369 = vmatpush2.bf16.msra.mxu0 0
        %370 = vmatprep.mubr.bf16.mxu0 0
        %371 = vmatmul.mubr.bf16.gmra.mxu0 %v336
        %v372 = vpop.f32.mrf.mxu0
        %v373 = vadd.f32 0.0, %v372
        %v374 = vpop.f32.mrf.mxu0
        %v375 = vpop.f32.mrf.mxu0
        %v376 = vpop.f32.mrf.mxu0
        %377 = vdwg.mxu0
        %vm378 = vcmask 130048
        %v380 = vsel %vm378, %v297, 0
        %382 = vmatprep.subr.bf16.mxu0 0
        %383 = vmatpush1.bf16.msra.mxu0 0
        %384 = vmatprep.subr.bf16.mxu0 0
        %385 = vmatpush1.bf16.msra.mxu0 0
        %386 = vmatprep.subr.bf16.mxu0 0
        %387 = vmatpush1.bf16.msra.mxu0 0
        %388 = vmatprep.subr.bf16.mxu0 0
        %389 = vmatpush1.bf16.msra.mxu0 0
        %390 = vmatprep.subr.bf16.mxu0 0
        %391 = vmatpush1.bf16.msra.mxu0 0
        %392 = vmatprep.subr.bf16.mxu0 0
        %393 = vmatpush1.bf16.msra.mxu0 0
        %394 = vmatprep.subr.bf16.mxu0 0
        %395 = vmatpush1.bf16.msra.mxu0 0
        %396 = vmatprep.subr.bf16.mxu0 %v309
        %397 = vmatpush1.bf16.msra.mxu0 %v308
        %398 = vmatprep.subr.bf16.mxu0 0
        %399 = vmatpush2.bf16.msra.mxu0 0
        %400 = vmatprep.subr.bf16.mxu0 0
        %401 = vmatpush2.bf16.msra.mxu0 0
        %402 = vmatprep.subr.bf16.mxu0 0
        %403 = vmatpush2.bf16.msra.mxu0 0
        %404 = vmatprep.subr.bf16.mxu0 0
        %405 = vmatpush2.bf16.msra.mxu0 0
        %406 = vmatprep.subr.bf16.mxu0 0
        %407 = vmatpush2.bf16.msra.mxu0 0
        %408 = vmatprep.subr.bf16.mxu0 0
        %409 = vmatpush2.bf16.msra.mxu0 0
        %410 = vmatprep.subr.bf16.mxu0 0
        %411 = vmatpush2.bf16.msra.mxu0 0
        %412 = vmatprep.subr.bf16.mxu0 0
        %413 = vmatpush2.bf16.msra.mxu0 0
        %414 = vmatprep.mubr.bf16.mxu0 0
        %415 = vmatmul.mubr.bf16.gmra.mxu0 %v380
        %v416 = vpop.f32.mrf.mxu0
        %v417 = vadd.f32 0.0, %v416
        %v418 = vpop.f32.mrf.mxu0
        %v419 = vadd.f32 0.0, %v418
        %v420 = vpop.f32.mrf.mxu0
        %v421 = vadd.f32 0.0, %v420
        %v422 = vpop.f32.mrf.mxu0
        %v423 = vadd.f32 0.0, %v422
        %424 = vdwg.mxu0
        %v425 = vpack.c.bf16 %v373, %v373
        %v426 = vpack.c.bf16 %v421, %v417
        %v427 = vpack.c.bf16 %v423, %v419
        %v429 = vsel %vm378, %v425, 0
        %v432 = vsel %vm378, %v426, 0
        %434 = vmatprep.subr.bf16.mxu0 0
        %435 = vmatpush1.bf16.xpose.msra.mxu0 0
        %436 = vmatprep.subr.bf16.mxu0 0
        %437 = vmatpush1.bf16.xpose.msra.mxu0 0
        %438 = vmatprep.subr.bf16.mxu0 0
        %439 = vmatpush1.bf16.xpose.msra.mxu0 0
        %440 = vmatprep.subr.bf16.mxu0 0
        %441 = vmatpush1.bf16.xpose.msra.mxu0 0
        %442 = vmatprep.subr.bf16.mxu0 0
        %443 = vmatpush1.bf16.xpose.msra.mxu0 0
        %444 = vmatprep.subr.bf16.mxu0 0
        %445 = vmatpush1.bf16.xpose.msra.mxu0 0
        %446 = vmatprep.subr.bf16.mxu0 0
        %447 = vmatpush1.bf16.xpose.msra.mxu0 0
        %448 = vmatprep.subr.bf16.mxu0 0
        %449 = vmatpush1.bf16.xpose.msra.mxu0 %v432
        %450 = vmatprep.subr.bf16.mxu0 0
        %451 = vmatpush2.bf16.xpose.msra.mxu0 0
        %452 = vmatprep.subr.bf16.mxu0 0
        %453 = vmatpush2.bf16.xpose.msra.mxu0 0
        %454 = vmatprep.subr.bf16.mxu0 0
        %455 = vmatpush2.bf16.xpose.msra.mxu0 0
        %456 = vmatprep.subr.bf16.mxu0 0
        %457 = vmatpush2.bf16.xpose.msra.mxu0 0
        %458 = vmatprep.subr.bf16.mxu0 0
        %459 = vmatpush2.bf16.xpose.msra.mxu0 0
        %460 = vmatprep.subr.bf16.mxu0 0
        %461 = vmatpush2.bf16.xpose.msra.mxu0 0
        %462 = vmatprep.subr.bf16.mxu0 0
        %463 = vmatpush2.bf16.xpose.msra.mxu0 0
        %464 = vmatprep.subr.bf16.mxu0 0
        %465 = vmatpush2.bf16.xpose.msra.mxu0 0
        %466 = vmatprep.mubr.bf16.mxu0 0
        %467 = vmatmul.mubr.bf16.gmra.mxu0 %v429
        %v468 = vpop.f32.mrf.mxu0
        %v469 = vadd.f32 0.0, %v468
        %v470 = vpop.f32.mrf.mxu0
        %v471 = vpop.f32.mrf.mxu0
        %v472 = vpop.f32.mrf.mxu0
        %473 = vdwg.mxu0
        %v474 = vmul.f32 %v469, 0.25
        %v475 = vsel %vm378, %v474, -inf
        %476 = vmax.xlane.f32.xlu0 %v475
        %v477 = vpop.xlane.xlu0 %476
        %v478 = vsub.f32 %v474, %v477
        %v479 = vmul.f32 %v478, 1.442695
        %v480 = vpow.pop %v479
        %v481 = vsel %vm378, %v480, 0.0
        %482 = vadd.xlane.f32.xlu0 %v481
        %v483 = vpop.xlane.xlu0 %482
        %v484 = vrcp.pop %v483
        %v485 = vmul.f32 %v480, %v484
        %v486 = vpack.c.bf16 %v485, %v485
        %v488 = vsel %vm378, %v486, 0
        %490 = vmatprep.subr.bf16.mxu0 0
        %491 = vmatpush1.bf16.msra.mxu0 0
        %492 = vmatprep.subr.bf16.mxu0 0
        %493 = vmatpush1.bf16.msra.mxu0 0
        %494 = vmatprep.subr.bf16.mxu0 0
        %495 = vmatpush1.bf16.msra.mxu0 0
        %496 = vmatprep.subr.bf16.mxu0 0
        %497 = vmatpush1.bf16.msra.mxu0 0
        %498 = vmatprep.subr.bf16.mxu0 0
        %499 = vmatpush1.bf16.msra.mxu0 0
        %500 = vmatprep.subr.bf16.mxu0 0
        %501 = vmatpush1.bf16.msra.mxu0 0
        %502 = vmatprep.subr.bf16.mxu0 0
        %503 = vmatpush1.bf16.msra.mxu0 0
        %504 = vmatprep.subr.bf16.mxu0 0
        %505 = vmatpush1.bf16.msra.mxu0 %v427
        %506 = vmatprep.subr.bf16.mxu0 0
        %507 = vmatpush2.bf16.msra.mxu0 0
        %508 = vmatprep.subr.bf16.mxu0 0
        %509 = vmatpush2.bf16.msra.mxu0 0
        %510 = vmatprep.subr.bf16.mxu0 0
        %511 = vmatpush2.bf16.msra.mxu0 0
        %512 = vmatprep.subr.bf16.mxu0 0
        %513 = vmatpush2.bf16.msra.mxu0 0
        %514 = vmatprep.subr.bf16.mxu0 0
        %515 = vmatpush2.bf16.msra.mxu0 0
        %516 = vmatprep.subr.bf16.mxu0 0
        %517 = vmatpush2.bf16.msra.mxu0 0
        %518 = vmatprep.subr.bf16.mxu0 0
        %519 = vmatpush2.bf16.msra.mxu0 0
        %520 = vmatprep.subr.bf16.mxu0 0
        %521 = vmatpush2.bf16.msra.mxu0 0
        %522 = vmatprep.mubr.bf16.mxu0 0
        %523 = vmatmul.mubr.bf16.gmra.mxu0 %v488
        %v524 = vpop.f32.mrf.mxu0
        %v525 = vadd.f32 0.0, %v524
        %v526 = vpop.f32.mrf.mxu0
        %v527 = vpop.f32.mrf.mxu0
        %v528 = vpop.f32.mrf.mxu0
        %529 = vdwg.mxu0
        %531 = vrot.lane.b32.xlu0 %v425, 112
        %v532 = vpop.permute.xlu0 %531
        %534 = vrot.lane.b32.xlu0 %v426, 112
        %v535 = vpop.permute.xlu0 %534
        %v537 = vsel %vm378, %v532, 0
        %v540 = vsel %vm378, %v535, 0
        %542 = vmatprep.subr.bf16.mxu0 0
        %543 = vmatpush1.bf16.xpose.msra.mxu0 0
        %544 = vmatprep.subr.bf16.mxu0 0
        %545 = vmatpush1.bf16.xpose.msra.mxu0 0
        %546 = vmatprep.subr.bf16.mxu0 0
        %547 = vmatpush1.bf16.xpose.msra.mxu0 0
        %548 = vmatprep.subr.bf16.mxu0 0
        %549 = vmatpush1.bf16.xpose.msra.mxu0 0
        %550 = vmatprep.subr.bf16.mxu0 0
        %551 = vmatpush1.bf16.xpose.msra.mxu0 0
        %552 = vmatprep.subr.bf16.mxu0 0
        %553 = vmatpush1.bf16.xpose.msra.mxu0 0
        %554 = vmatprep.subr.bf16.mxu0 0
        %555 = vmatpush1.bf16.xpose.msra.mxu0 0
        %556 = vmatprep.subr.bf16.mxu0 0
        %557 = vmatpush1.bf16.xpose.msra.mxu0 %v540
        %558 = vmatprep.subr.bf16.mxu0 0
        %559 = vmatpush2.bf16.xpose.msra.mxu0 0
        %560 = vmatprep.subr.bf16.mxu0 0
        %561 = vmatpush2.bf16.xpose.msra.mxu0 0
        %562 = vmatprep.subr.bf16.mxu0 0
        %563 = vmatpush2.bf16.xpose.msra.mxu0 0
        %564 = vmatprep.subr.bf16.mxu0 0
        %565 = vmatpush2.bf16.xpose.msra.mxu0 0
        %566 = vmatprep.subr.bf16.mxu0 0
        %567 = vmatpush2.bf16.xpose.msra.mxu0 0
        %568 = vmatprep.subr.bf16.mxu0 0
        %569 = vmatpush2.bf16.xpose.msra.mxu0 0
        %570 = vmatprep.subr.bf16.mxu0 0
        %571 = vmatpush2.bf16.xpose.msra.mxu0 0
        %572 = vmatprep.subr.bf16.mxu0 0
        %573 = vmatpush2.bf16.xpose.msra.mxu0 0
        %574 = vmatprep.mubr.bf16.mxu0 0
        %575 = vmatmul.mubr.bf16.gmra.mxu0 %v537
        %v576 = vpop.f32.mrf.mxu0
        %v577 = vadd.f32 0.0, %v576
        %v578 = vpop.f32.mrf.mxu0
        %v579 = vpop.f32.mrf.mxu0
        %v580 = vpop.f32.mrf.mxu0
        %581 = vdwg.mxu0
        %v582 = vmul.f32 %v577, 0.25
        %v583 = vsel %vm378, %v582, -inf
        %584 = vmax.xlane.f32.xlu0 %v583
        %v585 = vpop.xlane.xlu0 %584
        %v586 = vsub.f32 %v582, %v585
        %v587 = vmul.f32 %v586, 1.442695
        %v588 = vpow.pop %v587
        %v589 = vsel %vm378, %v588, 0.0
        %590 = vadd.xlane.f32.xlu0 %v589
        %v591 = vpop.xlane.xlu0 %590
        %v592 = vrcp.pop %v591
        %v593 = vmul.f32 %v588, %v592
        %v594 = vpack.c.bf16 %v593, %v593
        %596 = vrot.lane.b32.xlu0 %v427, 112
        %v597 = vpop.permute.xlu0 %596
        %v600 = vsel %vm378, %v594, 0
        %602 = vmatprep.subr.bf16.mxu0 0
        %603 = vmatpush1.bf16.msra.mxu0 0
        %604 = vmatprep.subr.bf16.mxu0 0
        %605 = vmatpush1.bf16.msra.mxu0 0
        %606 = vmatprep.subr.bf16.mxu0 0
        %607 = vmatpush1.bf16.msra.mxu0 0
        %608 = vmatprep.subr.bf16.mxu0 0
        %609 = vmatpush1.bf16.msra.mxu0 0
        %610 = vmatprep.subr.bf16.mxu0 0
        %611 = vmatpush1.bf16.msra.mxu0 0
        %612 = vmatprep.subr.bf16.mxu0 0
        %613 = vmatpush1.bf16.msra.mxu0 0
        %614 = vmatprep.subr.bf16.mxu0 0
        %615 = vmatpush1.bf16.msra.mxu0 0
        %616 = vmatprep.subr.bf16.mxu0 0
        %617 = vmatpush1.bf16.msra.mxu0 %v597
        %618 = vmatprep.subr.bf16.mxu0 0
        %619 = vmatpush2.bf16.msra.mxu0 0
        %620 = vmatprep.subr.bf16.mxu0 0
        %621 = vmatpush2.bf16.msra.mxu0 0
        %622 = vmatprep.subr.bf16.mxu0 0
        %623 = vmatpush2.bf16.msra.mxu0 0
        %624 = vmatprep.subr.bf16.mxu0 0
        %625 = vmatpush2.bf16.msra.mxu0 0
        %626 = vmatprep.subr.bf16.mxu0 0
        %627 = vmatpush2.bf16.msra.mxu0 0
        %628 = vmatprep.subr.bf16.mxu0 0
        %629 = vmatpush2.bf16.msra.mxu0 0
        %630 = vmatprep.subr.bf16.mxu0 0
        %631 = vmatpush2.bf16.msra.mxu0 0
        %632 = vmatprep.subr.bf16.mxu0 0
        %633 = vmatpush2.bf16.msra.mxu0 0
        %634 = vmatprep.mubr.bf16.mxu0 0
        %635 = vmatmul.mubr.bf16.gmra.mxu0 %v600
        %v636 = vpop.f32.mrf.mxu0
        %v637 = vadd.f32 0.0, %v636
        %v638 = vpop.f32.mrf.mxu0
        %v639 = vpop.f32.mrf.mxu0
        %v640 = vpop.f32.mrf.mxu0
        %641 = vdwg.mxu0
        %642 = vrot.lane.b32.xlu0 %v425, 96
        %v643 = vpop.permute.xlu0 %642
        %644 = vrot.lane.b32.xlu0 %v426, 96
        %v645 = vpop.permute.xlu0 %644
        %v647 = vsel %vm378, %v643, 0
        %v650 = vsel %vm378, %v645, 0
        %652 = vmatprep.subr.bf16.mxu0 0
        %653 = vmatpush1.bf16.xpose.msra.mxu0 0
        %654 = vmatprep.subr.bf16.mxu0 0
        %655 = vmatpush1.bf16.xpose.msra.mxu0 0
        %656 = vmatprep.subr.bf16.mxu0 0
        %657 = vmatpush1.bf16.xpose.msra.mxu0 0
        %658 = vmatprep.subr.bf16.mxu0 0
        %659 = vmatpush1.bf16.xpose.msra.mxu0 0
        %660 = vmatprep.subr.bf16.mxu0 0
        %661 = vmatpush1.bf16.xpose.msra.mxu0 0
        %662 = vmatprep.subr.bf16.mxu0 0
        %663 = vmatpush1.bf16.xpose.msra.mxu0 0
        %664 = vmatprep.subr.bf16.mxu0 0
        %665 = vmatpush1.bf16.xpose.msra.mxu0 0
        %666 = vmatprep.subr.bf16.mxu0 0
        %667 = vmatpush1.bf16.xpose.msra.mxu0 %v650
        %668 = vmatprep.subr.bf16.mxu0 0
        %669 = vmatpush2.bf16.xpose.msra.mxu0 0
        %670 = vmatprep.subr.bf16.mxu0 0
        %671 = vmatpush2.bf16.xpose.msra.mxu0 0
        %672 = vmatprep.subr.bf16.mxu0 0
        %673 = vmatpush2.bf16.xpose.msra.mxu0 0
        %674 = vmatprep.subr.bf16.mxu0 0
        %675 = vmatpush2.bf16.xpose.msra.mxu0 0
        %676 = vmatprep.subr.bf16.mxu0 0
        %677 = vmatpush2.bf16.xpose.msra.mxu0 0
        %678 = vmatprep.subr.bf16.mxu0 0
        %679 = vmatpush2.bf16.xpose.msra.mxu0 0
        %680 = vmatprep.subr.bf16.mxu0 0
        %681 = vmatpush2.bf16.xpose.msra.mxu0 0
        %682 = vmatprep.subr.bf16.mxu0 0
        %683 = vmatpush2.bf16.xpose.msra.mxu0 0
        %684 = vmatprep.mubr.bf16.mxu0 0
        %685 = vmatmul.mubr.bf16.gmra.mxu0 %v647
        %v686 = vpop.f32.mrf.mxu0
        %v687 = vadd.f32 0.0, %v686
        %v688 = vpop.f32.mrf.mxu0
        %v689 = vpop.f32.mrf.mxu0
        %v690 = vpop.f32.mrf.mxu0
        %691 = vdwg.mxu0
        %v692 = vmul.f32 %v687, 0.25
        %v693 = vsel %vm378, %v692, -inf
        %694 = vmax.xlane.f32.xlu0 %v693
        %v695 = vpop.xlane.xlu0 %694
        %v696 = vsub.f32 %v692, %v695
        %v697 = vmul.f32 %v696, 1.442695
        %v698 = vpow.pop %v697
        %v699 = vsel %vm378, %v698, 0.0
        %700 = vadd.xlane.f32.xlu0 %v699
        %v701 = vpop.xlane.xlu0 %700
        %v702 = vrcp.pop %v701
        %v703 = vmul.f32 %v698, %v702
        %v704 = vpack.c.bf16 %v703, %v703
        %705 = vrot.lane.b32.xlu0 %v427, 96
        %v706 = vpop.permute.xlu0 %705
        %v709 = vsel %vm378, %v704, 0
        %711 = vmatprep.subr.bf16.mxu0 0
        %712 = vmatpush1.bf16.msra.mxu0 0
        %713 = vmatprep.subr.bf16.mxu0 0
        %714 = vmatpush1.bf16.msra.mxu0 0
        %715 = vmatprep.subr.bf16.mxu0 0
        %716 = vmatpush1.bf16.msra.mxu0 0
        %717 = vmatprep.subr.bf16.mxu0 0
        %718 = vmatpush1.bf16.msra.mxu0 0
        %719 = vmatprep.subr.bf16.mxu0 0
        %720 = vmatpush1.bf16.msra.mxu0 0
        %721 = vmatprep.subr.bf16.mxu0 0
        %722 = vmatpush1.bf16.msra.mxu0 0
        %723 = vmatprep.subr.bf16.mxu0 0
        %724 = vmatpush1.bf16.msra.mxu0 0
        %725 = vmatprep.subr.bf16.mxu0 0
        %726 = vmatpush1.bf16.msra.mxu0 %v706
        %727 = vmatprep.subr.bf16.mxu0 0
        %728 = vmatpush2.bf16.msra.mxu0 0
        %729 = vmatprep.subr.bf16.mxu0 0
        %730 = vmatpush2.bf16.msra.mxu0 0
        %731 = vmatprep.subr.bf16.mxu0 0
        %732 = vmatpush2.bf16.msra.mxu0 0
        %733 = vmatprep.subr.bf16.mxu0 0
        %734 = vmatpush2.bf16.msra.mxu0 0
        %735 = vmatprep.subr.bf16.mxu0 0
        %736 = vmatpush2.bf16.msra.mxu0 0
        %737 = vmatprep.subr.bf16.mxu0 0
        %738 = vmatpush2.bf16.msra.mxu0 0
        %739 = vmatprep.subr.bf16.mxu0 0
        %740 = vmatpush2.bf16.msra.mxu0 0
        %741 = vmatprep.subr.bf16.mxu0 0
        %742 = vmatpush2.bf16.msra.mxu0 0
        %743 = vmatprep.mubr.bf16.mxu0 0
        %744 = vmatmul.mubr.bf16.gmra.mxu0 %v709
        %v745 = vpop.f32.mrf.mxu0
        %v746 = vadd.f32 0.0, %v745
        %v747 = vpop.f32.mrf.mxu0
        %v748 = vpop.f32.mrf.mxu0
        %v749 = vpop.f32.mrf.mxu0
        %750 = vdwg.mxu0
        %751 = vrot.lane.b32.xlu0 %v425, 80
        %v752 = vpop.permute.xlu0 %751
        %753 = vrot.lane.b32.xlu0 %v426, 80
        %v754 = vpop.permute.xlu0 %753
        %v756 = vsel %vm378, %v752, 0
        %v759 = vsel %vm378, %v754, 0
        %761 = vmatprep.subr.bf16.mxu0 0
        %762 = vmatpush1.bf16.xpose.msra.mxu0 0
        %763 = vmatprep.subr.bf16.mxu0 0
        %764 = vmatpush1.bf16.xpose.msra.mxu0 0
        %765 = vmatprep.subr.bf16.mxu0 0
        %766 = vmatpush1.bf16.xpose.msra.mxu0 0
        %767 = vmatprep.subr.bf16.mxu0 0
        %768 = vmatpush1.bf16.xpose.msra.mxu0 0
        %769 = vmatprep.subr.bf16.mxu0 0
        %770 = vmatpush1.bf16.xpose.msra.mxu0 0
        %771 = vmatprep.subr.bf16.mxu0 0
        %772 = vmatpush1.bf16.xpose.msra.mxu0 0
        %773 = vmatprep.subr.bf16.mxu0 0
        %774 = vmatpush1.bf16.xpose.msra.mxu0 0
        %775 = vmatprep.subr.bf16.mxu0 0
        %776 = vmatpush1.bf16.xpose.msra.mxu0 %v759
        %777 = vmatprep.subr.bf16.mxu0 0
        %778 = vmatpush2.bf16.xpose.msra.mxu0 0
        %779 = vmatprep.subr.bf16.mxu0 0
        %780 = vmatpush2.bf16.xpose.msra.mxu0 0
        %781 = vmatprep.subr.bf16.mxu0 0
        %782 = vmatpush2.bf16.xpose.msra.mxu0 0
        %783 = vmatprep.subr.bf16.mxu0 0
        %784 = vmatpush2.bf16.xpose.msra.mxu0 0
        %785 = vmatprep.subr.bf16.mxu0 0
        %786 = vmatpush2.bf16.xpose.msra.mxu0 0
        %787 = vmatprep.subr.bf16.mxu0 0
        %788 = vmatpush2.bf16.xpose.msra.mxu0 0
        %789 = vmatprep.subr.bf16.mxu0 0
        %790 = vmatpush2.bf16.xpose.msra.mxu0 0
        %791 = vmatprep.subr.bf16.mxu0 0
        %792 = vmatpush2.bf16.xpose.msra.mxu0 0
        %793 = vmatprep.mubr.bf16.mxu0 0
        %794 = vmatmul.mubr.bf16.gmra.mxu0 %v756
        %v795 = vpop.f32.mrf.mxu0
        %v796 = vadd.f32 0.0, %v795
        %v797 = vpop.f32.mrf.mxu0
        %v798 = vpop.f32.mrf.mxu0
        %v799 = vpop.f32.mrf.mxu0
        %800 = vdwg.mxu0
        %v801 = vmul.f32 %v796, 0.25
        %v802 = vsel %vm378, %v801, -inf
        %803 = vmax.xlane.f32.xlu0 %v802
        %v804 = vpop.xlane.xlu0 %803
        %v805 = vsub.f32 %v801, %v804
        %v806 = vmul.f32 %v805, 1.442695
        %v807 = vpow.pop %v806
        %v808 = vsel %vm378, %v807, 0.0
        %809 = vadd.xlane.f32.xlu0 %v808
        %v810 = vpop.xlane.xlu0 %809
        %v811 = vrcp.pop %v810
        %v812 = vmul.f32 %v807, %v811
        %v813 = vpack.c.bf16 %v812, %v812
        %814 = vrot.lane.b32.xlu0 %v427, 80
        %v815 = vpop.permute.xlu0 %814
        %v818 = vsel %vm378, %v813, 0
        %820 = vmatprep.subr.bf16.mxu0 0
        %821 = vmatpush1.bf16.msra.mxu0 0
        %822 = vmatprep.subr.bf16.mxu0 0
        %823 = vmatpush1.bf16.msra.mxu0 0
        %824 = vmatprep.subr.bf16.mxu0 0
        %825 = vmatpush1.bf16.msra.mxu0 0
        %826 = vmatprep.subr.bf16.mxu0 0
        %827 = vmatpush1.bf16.msra.mxu0 0
        %828 = vmatprep.subr.bf16.mxu0 0
        %829 = vmatpush1.bf16.msra.mxu0 0
        %830 = vmatprep.subr.bf16.mxu0 0
        %831 = vmatpush1.bf16.msra.mxu0 0
        %832 = vmatprep.subr.bf16.mxu0 0
        %833 = vmatpush1.bf16.msra.mxu0 0
        %834 = vmatprep.subr.bf16.mxu0 0
        %835 = vmatpush1.bf16.msra.mxu0 %v815
        %836 = vmatprep.subr.bf16.mxu0 0
        %837 = vmatpush2.bf16.msra.mxu0 0
        %838 = vmatprep.subr.bf16.mxu0 0
        %839 = vmatpush2.bf16.msra.mxu0 0
        %840 = vmatprep.subr.bf16.mxu0 0
        %841 = vmatpush2.bf16.msra.mxu0 0
        %842 = vmatprep.subr.bf16.mxu0 0
        %843 = vmatpush2.bf16.msra.mxu0 0
        %844 = vmatprep.subr.bf16.mxu0 0
        %845 = vmatpush2.bf16.msra.mxu0 0
        %846 = vmatprep.subr.bf16.mxu0 0
        %847 = vmatpush2.bf16.msra.mxu0 0
        %848 = vmatprep.subr.bf16.mxu0 0
        %849 = vmatpush2.bf16.msra.mxu0 0
        %850 = vmatprep.subr.bf16.mxu0 0
        %851 = vmatpush2.bf16.msra.mxu0 0
        %852 = vmatprep.mubr.bf16.mxu0 0
        %853 = vmatmul.mubr.bf16.gmra.mxu0 %v818
        %v854 = vpop.f32.mrf.mxu0
        %v855 = vadd.f32 0.0, %v854
        %v856 = vpop.f32.mrf.mxu0
        %v857 = vpop.f32.mrf.mxu0
        %v858 = vpop.f32.mrf.mxu0
        %859 = vdwg.mxu0
        %860 = vrot.lane.b32.xlu0 %v425, 64
        %v861 = vpop.permute.xlu0 %860
        %862 = vrot.lane.b32.xlu0 %v426, 64
        %v863 = vpop.permute.xlu0 %862
        %v865 = vsel %vm378, %v861, 0
        %v868 = vsel %vm378, %v863, 0
        %870 = vmatprep.subr.bf16.mxu0 0
        %871 = vmatpush1.bf16.xpose.msra.mxu0 0
        %872 = vmatprep.subr.bf16.mxu0 0
        %873 = vmatpush1.bf16.xpose.msra.mxu0 0
        %874 = vmatprep.subr.bf16.mxu0 0
        %875 = vmatpush1.bf16.xpose.msra.mxu0 0
        %876 = vmatprep.subr.bf16.mxu0 0
        %877 = vmatpush1.bf16.xpose.msra.mxu0 0
        %878 = vmatprep.subr.bf16.mxu0 0
        %879 = vmatpush1.bf16.xpose.msra.mxu0 0
        %880 = vmatprep.subr.bf16.mxu0 0
        %881 = vmatpush1.bf16.xpose.msra.mxu0 0
        %882 = vmatprep.subr.bf16.mxu0 0
        %883 = vmatpush1.bf16.xpose.msra.mxu0 0
        %884 = vmatprep.subr.bf16.mxu0 0
        %885 = vmatpush1.bf16.xpose.msra.mxu0 %v868
        %886 = vmatprep.subr.bf16.mxu0 0
        %887 = vmatpush2.bf16.xpose.msra.mxu0 0
        %888 = vmatprep.subr.bf16.mxu0 0
        %889 = vmatpush2.bf16.xpose.msra.mxu0 0
        %890 = vmatprep.subr.bf16.mxu0 0
        %891 = vmatpush2.bf16.xpose.msra.mxu0 0
        %892 = vmatprep.subr.bf16.mxu0 0
        %893 = vmatpush2.bf16.xpose.msra.mxu0 0
        %894 = vmatprep.subr.bf16.mxu0 0
        %895 = vmatpush2.bf16.xpose.msra.mxu0 0
        %896 = vmatprep.subr.bf16.mxu0 0
        %897 = vmatpush2.bf16.xpose.msra.mxu0 0
        %898 = vmatprep.subr.bf16.mxu0 0
        %899 = vmatpush2.bf16.xpose.msra.mxu0 0
        %900 = vmatprep.subr.bf16.mxu0 0
        %901 = vmatpush2.bf16.xpose.msra.mxu0 0
        %902 = vmatprep.mubr.bf16.mxu0 0
        %903 = vmatmul.mubr.bf16.gmra.mxu0 %v865
        %v904 = vpop.f32.mrf.mxu0
        %v905 = vadd.f32 0.0, %v904
        %v906 = vpop.f32.mrf.mxu0
        %v907 = vpop.f32.mrf.mxu0
        %v908 = vpop.f32.mrf.mxu0
        %909 = vdwg.mxu0
        %v910 = vmul.f32 %v905, 0.25
        %v911 = vsel %vm378, %v910, -inf
        %912 = vmax.xlane.f32.xlu0 %v911
        %v913 = vpop.xlane.xlu0 %912
        %v914 = vsub.f32 %v910, %v913
        %v915 = vmul.f32 %v914, 1.442695
        %v916 = vpow.pop %v915
        %v917 = vsel %vm378, %v916, 0.0
        %918 = vadd.xlane.f32.xlu0 %v917
        %v919 = vpop.xlane.xlu0 %918
        %v920 = vrcp.pop %v919
        %v921 = vmul.f32 %v916, %v920
        %v922 = vpack.c.bf16 %v921, %v921
        %923 = vrot.lane.b32.xlu0 %v427, 64
        %v924 = vpop.permute.xlu0 %923
        %v927 = vsel %vm378, %v922, 0
        %929 = vmatprep.subr.bf16.mxu0 0
        %930 = vmatpush1.bf16.msra.mxu0 0
        %931 = vmatprep.subr.bf16.mxu0 0
        %932 = vmatpush1.bf16.msra.mxu0 0
        %933 = vmatprep.subr.bf16.mxu0 0
        %934 = vmatpush1.bf16.msra.mxu0 0
        %935 = vmatprep.subr.bf16.mxu0 0
        %936 = vmatpush1.bf16.msra.mxu0 0
        %937 = vmatprep.subr.bf16.mxu0 0
        %938 = vmatpush1.bf16.msra.mxu0 0
        %939 = vmatprep.subr.bf16.mxu0 0
        %940 = vmatpush1.bf16.msra.mxu0 0
        %941 = vmatprep.subr.bf16.mxu0 0
        %942 = vmatpush1.bf16.msra.mxu0 0
        %943 = vmatprep.subr.bf16.mxu0 0
        %944 = vmatpush1.bf16.msra.mxu0 %v924
        %945 = vmatprep.subr.bf16.mxu0 0
        %946 = vmatpush2.bf16.msra.mxu0 0
        %947 = vmatprep.subr.bf16.mxu0 0
        %948 = vmatpush2.bf16.msra.mxu0 0
        %949 = vmatprep.subr.bf16.mxu0 0
        %950 = vmatpush2.bf16.msra.mxu0 0
        %951 = vmatprep.subr.bf16.mxu0 0
        %952 = vmatpush2.bf16.msra.mxu0 0
        %953 = vmatprep.subr.bf16.mxu0 0
        %954 = vmatpush2.bf16.msra.mxu0 0
        %955 = vmatprep.subr.bf16.mxu0 0
        %956 = vmatpush2.bf16.msra.mxu0 0
        %957 = vmatprep.subr.bf16.mxu0 0
        %958 = vmatpush2.bf16.msra.mxu0 0
        %959 = vmatprep.subr.bf16.mxu0 0
        %960 = vmatpush2.bf16.msra.mxu0 0
        %961 = vmatprep.mubr.bf16.mxu0 0
        %962 = vmatmul.mubr.bf16.gmra.mxu0 %v927
        %v963 = vpop.f32.mrf.mxu0
        %v964 = vadd.f32 0.0, %v963
        %v965 = vpop.f32.mrf.mxu0
        %v966 = vpop.f32.mrf.mxu0
        %v967 = vpop.f32.mrf.mxu0
        %968 = vdwg.mxu0
        %969 = vrot.lane.b32.xlu0 %v425, 48
        %v970 = vpop.permute.xlu0 %969
        %971 = vrot.lane.b32.xlu0 %v426, 48
        %v972 = vpop.permute.xlu0 %971
        %v974 = vsel %vm378, %v970, 0
        %v977 = vsel %vm378, %v972, 0
        %979 = vmatprep.subr.bf16.mxu0 0
        %980 = vmatpush1.bf16.xpose.msra.mxu0 0
        %981 = vmatprep.subr.bf16.mxu0 0
        %982 = vmatpush1.bf16.xpose.msra.mxu0 0
        %983 = vmatprep.subr.bf16.mxu0 0
        %984 = vmatpush1.bf16.xpose.msra.mxu0 0
        %985 = vmatprep.subr.bf16.mxu0 0
        %986 = vmatpush1.bf16.xpose.msra.mxu0 0
        %987 = vmatprep.subr.bf16.mxu0 0
        %988 = vmatpush1.bf16.xpose.msra.mxu0 0
        %989 = vmatprep.subr.bf16.mxu0 0
        %990 = vmatpush1.bf16.xpose.msra.mxu0 0
        %991 = vmatprep.subr.bf16.mxu0 0
        %992 = vmatpush1.bf16.xpose.msra.mxu0 0
        %993 = vmatprep.subr.bf16.mxu0 0
        %994 = vmatpush1.bf16.xpose.msra.mxu0 %v977
        %995 = vmatprep.subr.bf16.mxu0 0
        %996 = vmatpush2.bf16.xpose.msra.mxu0 0
        %997 = vmatprep.subr.bf16.mxu0 0
        %998 = vmatpush2.bf16.xpose.msra.mxu0 0
        %999 = vmatprep.subr.bf16.mxu0 0
        %1000 = vmatpush2.bf16.xpose.msra.mxu0 0
        %1001 = vmatprep.subr.bf16.mxu0 0
        %1002 = vmatpush2.bf16.xpose.msra.mxu0 0
        %1003 = vmatprep.subr.bf16.mxu0 0
        %1004 = vmatpush2.bf16.xpose.msra.mxu0 0
        %1005 = vmatprep.subr.bf16.mxu0 0
        %1006 = vmatpush2.bf16.xpose.msra.mxu0 0
        %1007 = vmatprep.subr.bf16.mxu0 0
        %1008 = vmatpush2.bf16.xpose.msra.mxu0 0
        %1009 = vmatprep.subr.bf16.mxu0 0
        %1010 = vmatpush2.bf16.xpose.msra.mxu0 0
        %1011 = vmatprep.mubr.bf16.mxu0 0
        %1012 = vmatmul.mubr.bf16.gmra.mxu0 %v974
        %v1013 = vpop.f32.mrf.mxu0
        %v1014 = vadd.f32 0.0, %v1013
        %v1015 = vpop.f32.mrf.mxu0
        %v1016 = vpop.f32.mrf.mxu0
        %v1017 = vpop.f32.mrf.mxu0
        %1018 = vdwg.mxu0
        %v1019 = vmul.f32 %v1014, 0.25
        %v1020 = vsel %vm378, %v1019, -inf
        %1021 = vmax.xlane.f32.xlu0 %v1020
        %v1022 = vpop.xlane.xlu0 %1021
        %v1023 = vsub.f32 %v1019, %v1022
        %v1024 = vmul.f32 %v1023, 1.442695
        %v1025 = vpow.pop %v1024
        %v1026 = vsel %vm378, %v1025, 0.0
        %1027 = vadd.xlane.f32.xlu0 %v1026
        %v1028 = vpop.xlane.xlu0 %1027
        %v1029 = vrcp.pop %v1028
        %v1030 = vmul.f32 %v1025, %v1029
        %v1031 = vpack.c.bf16 %v1030, %v1030
        %1032 = vrot.lane.b32.xlu0 %v427, 48
        %v1033 = vpop.permute.xlu0 %1032
        %v1036 = vsel %vm378, %v1031, 0
        %1038 = vmatprep.subr.bf16.mxu0 0
        %1039 = vmatpush1.bf16.msra.mxu0 0
        %1040 = vmatprep.subr.bf16.mxu0 0
        %1041 = vmatpush1.bf16.msra.mxu0 0
        %1042 = vmatprep.subr.bf16.mxu0 0
        %1043 = vmatpush1.bf16.msra.mxu0 0
        %1044 = vmatprep.subr.bf16.mxu0 0
        %1045 = vmatpush1.bf16.msra.mxu0 0
        %1046 = vmatprep.subr.bf16.mxu0 0
        %1047 = vmatpush1.bf16.msra.mxu0 0
        %1048 = vmatprep.subr.bf16.mxu0 0
        %1049 = vmatpush1.bf16.msra.mxu0 0
        %1050 = vmatprep.subr.bf16.mxu0 0
        %1051 = vmatpush1.bf16.msra.mxu0 0
        %1052 = vmatprep.subr.bf16.mxu0 0
        %1053 = vmatpush1.bf16.msra.mxu0 %v1033
        %1054 = vmatprep.subr.bf16.mxu0 0
        %1055 = vmatpush2.bf16.msra.mxu0 0
        %1056 = vmatprep.subr.bf16.mxu0 0
        %1057 = vmatpush2.bf16.msra.mxu0 0
        %1058 = vmatprep.subr.bf16.mxu0 0
        %1059 = vmatpush2.bf16.msra.mxu0 0
        %1060 = vmatprep.subr.bf16.mxu0 0
        %1061 = vmatpush2.bf16.msra.mxu0 0
        %1062 = vmatprep.subr.bf16.mxu0 0
        %1063 = vmatpush2.bf16.msra.mxu0 0
        %1064 = vmatprep.subr.bf16.mxu0 0
        %1065 = vmatpush2.bf16.msra.mxu0 0
        %1066 = vmatprep.subr.bf16.mxu0 0
        %1067 = vmatpush2.bf16.msra.mxu0 0
        %1068 = vmatprep.subr.bf16.mxu0 0
        %1069 = vmatpush2.bf16.msra.mxu0 0
        %1070 = vmatprep.mubr.bf16.mxu0 0
        %1071 = vmatmul.mubr.bf16.gmra.mxu0 %v1036
        %v1072 = vpop.f32.mrf.mxu0
        %v1073 = vadd.f32 0.0, %v1072
        %v1074 = vpop.f32.mrf.mxu0
        %v1075 = vpop.f32.mrf.mxu0
        %v1076 = vpop.f32.mrf.mxu0
        %1077 = vdwg.mxu0
        %1078 = vrot.lane.b32.xlu0 %v425, 32
        %v1079 = vpop.permute.xlu0 %1078
        %1080 = vrot.lane.b32.xlu0 %v426, 32
        %v1081 = vpop.permute.xlu0 %1080
        %v1083 = vsel %vm378, %v1079, 0
        %v1086 = vsel %vm378, %v1081, 0
        %1088 = vmatprep.subr.bf16.mxu0 0
        %1089 = vmatpush1.bf16.xpose.msra.mxu0 0
        %1090 = vmatprep.subr.bf16.mxu0 0
        %1091 = vmatpush1.bf16.xpose.msra.mxu0 0
        %1092 = vmatprep.subr.bf16.mxu0 0
        %1093 = vmatpush1.bf16.xpose.msra.mxu0 0
        %1094 = vmatprep.subr.bf16.mxu0 0
        %1095 = vmatpush1.bf16.xpose.msra.mxu0 0
        %1096 = vmatprep.subr.bf16.mxu0 0
        %1097 = vmatpush1.bf16.xpose.msra.mxu0 0
        %1098 = vmatprep.subr.bf16.mxu0 0
        %1099 = vmatpush1.bf16.xpose.msra.mxu0 0
        %1100 = vmatprep.subr.bf16.mxu0 0
        %1101 = vmatpush1.bf16.xpose.msra.mxu0 0
        %1102 = vmatprep.subr.bf16.mxu0 0
        %1103 = vmatpush1.bf16.xpose.msra.mxu0 %v1086
        %1104 = vmatprep.subr.bf16.mxu0 0
        %1105 = vmatpush2.bf16.xpose.msra.mxu0 0
        %1106 = vmatprep.subr.bf16.mxu0 0
        %1107 = vmatpush2.bf16.xpose.msra.mxu0 0
        %1108 = vmatprep.subr.bf16.mxu0 0
        %1109 = vmatpush2.bf16.xpose.msra.mxu0 0
        %1110 = vmatprep.subr.bf16.mxu0 0
        %1111 = vmatpush2.bf16.xpose.msra.mxu0 0
        %1112 = vmatprep.subr.bf16.mxu0 0
        %1113 = vmatpush2.bf16.xpose.msra.mxu0 0
        %1114 = vmatprep.subr.bf16.mxu0 0
        %1115 = vmatpush2.bf16.xpose.msra.mxu0 0
        %1116 = vmatprep.subr.bf16.mxu0 0
        %1117 = vmatpush2.bf16.xpose.msra.mxu0 0
        %1118 = vmatprep.subr.bf16.mxu0 0
        %1119 = vmatpush2.bf16.xpose.msra.mxu0 0
        %1120 = vmatprep.mubr.bf16.mxu0 0
        %1121 = vmatmul.mubr.bf16.gmra.mxu0 %v1083
        %v1122 = vpop.f32.mrf.mxu0
        %v1123 = vadd.f32 0.0, %v1122
        %v1124 = vpop.f32.mrf.mxu0
        %v1125 = vpop.f32.mrf.mxu0
        %v1126 = vpop.f32.mrf.mxu0
        %1127 = vdwg.mxu0
        %v1128 = vmul.f32 %v1123, 0.25
        %v1129 = vsel %vm378, %v1128, -inf
        %1130 = vmax.xlane.f32.xlu0 %v1129
        %v1131 = vpop.xlane.xlu0 %1130
        %v1132 = vsub.f32 %v1128, %v1131
        %v1133 = vmul.f32 %v1132, 1.442695
        %v1134 = vpow.pop %v1133
        %v1135 = vsel %vm378, %v1134, 0.0
        %1136 = vadd.xlane.f32.xlu0 %v1135
        %v1137 = vpop.xlane.xlu0 %1136
        %v1138 = vrcp.pop %v1137
        %v1139 = vmul.f32 %v1134, %v1138
        %v1140 = vpack.c.bf16 %v1139, %v1139
        %1141 = vrot.lane.b32.xlu0 %v427, 32
        %v1142 = vpop.permute.xlu0 %1141
        %v1145 = vsel %vm378, %v1140, 0
        %1147 = vmatprep.subr.bf16.mxu0 0
        %1148 = vmatpush1.bf16.msra.mxu0 0
        %1149 = vmatprep.subr.bf16.mxu0 0
        %1150 = vmatpush1.bf16.msra.mxu0 0
        %1151 = vmatprep.subr.bf16.mxu0 0
        %1152 = vmatpush1.bf16.msra.mxu0 0
        %1153 = vmatprep.subr.bf16.mxu0 0
        %1154 = vmatpush1.bf16.msra.mxu0 0
        %1155 = vmatprep.subr.bf16.mxu0 0
        %1156 = vmatpush1.bf16.msra.mxu0 0
        %1157 = vmatprep.subr.bf16.mxu0 0
        %1158 = vmatpush1.bf16.msra.mxu0 0
        %1159 = vmatprep.subr.bf16.mxu0 0
        %1160 = vmatpush1.bf16.msra.mxu0 0
        %1161 = vmatprep.subr.bf16.mxu0 0
        %1162 = vmatpush1.bf16.msra.mxu0 %v1142
        %1163 = vmatprep.subr.bf16.mxu0 0
        %1164 = vmatpush2.bf16.msra.mxu0 0
        %1165 = vmatprep.subr.bf16.mxu0 0
        %1166 = vmatpush2.bf16.msra.mxu0 0
        %1167 = vmatprep.subr.bf16.mxu0 0
        %1168 = vmatpush2.bf16.msra.mxu0 0
        %1169 = vmatprep.subr.bf16.mxu0 0
        %1170 = vmatpush2.bf16.msra.mxu0 0
        %1171 = vmatprep.subr.bf16.mxu0 0
        %1172 = vmatpush2.bf16.msra.mxu0 0
        %1173 = vmatprep.subr.bf16.mxu0 0
        %1174 = vmatpush2.bf16.msra.mxu0 0
        %1175 = vmatprep.subr.bf16.mxu0 0
        %1176 = vmatpush2.bf16.msra.mxu0 0
        %1177 = vmatprep.subr.bf16.mxu0 0
        %1178 = vmatpush2.bf16.msra.mxu0 0
        %1179 = vmatprep.mubr.bf16.mxu0 0
        %1180 = vmatmul.mubr.bf16.gmra.mxu0 %v1145
        %v1181 = vpop.f32.mrf.mxu0
        %v1182 = vadd.f32 0.0, %v1181
        %v1183 = vpop.f32.mrf.mxu0
        %v1184 = vpop.f32.mrf.mxu0
        %v1185 = vpop.f32.mrf.mxu0
        %1186 = vdwg.mxu0
        %1187 = vrot.lane.b32.xlu0 %v425, 16
        %v1188 = vpop.permute.xlu0 %1187
        %1189 = vrot.lane.b32.xlu0 %v426, 16
        %v1190 = vpop.permute.xlu0 %1189
        %v1192 = vsel %vm378, %v1188, 0
        %v1195 = vsel %vm378, %v1190, 0
        %1197 = vmatprep.subr.bf16.mxu0 0
        %1198 = vmatpush1.bf16.xpose.msra.mxu0 0
        %1199 = vmatprep.subr.bf16.mxu0 0
        %1200 = vmatpush1.bf16.xpose.msra.mxu0 0
        %1201 = vmatprep.subr.bf16.mxu0 0
        %1202 = vmatpush1.bf16.xpose.msra.mxu0 0
        %1203 = vmatprep.subr.bf16.mxu0 0
        %1204 = vmatpush1.bf16.xpose.msra.mxu0 0
        %1205 = vmatprep.subr.bf16.mxu0 0
        %1206 = vmatpush1.bf16.xpose.msra.mxu0 0
        %1207 = vmatprep.subr.bf16.mxu0 0
        %1208 = vmatpush1.bf16.xpose.msra.mxu0 0
        %1209 = vmatprep.subr.bf16.mxu0 0
        %1210 = vmatpush1.bf16.xpose.msra.mxu0 0
        %1211 = vmatprep.subr.bf16.mxu0 0
        %1212 = vmatpush1.bf16.xpose.msra.mxu0 %v1195
        %1213 = vmatprep.subr.bf16.mxu0 0
        %1214 = vmatpush2.bf16.xpose.msra.mxu0 0
        %1215 = vmatprep.subr.bf16.mxu0 0
        %1216 = vmatpush2.bf16.xpose.msra.mxu0 0
        %1217 = vmatprep.subr.bf16.mxu0 0
        %1218 = vmatpush2.bf16.xpose.msra.mxu0 0
        %1219 = vmatprep.subr.bf16.mxu0 0
        %1220 = vmatpush2.bf16.xpose.msra.mxu0 0
        %1221 = vmatprep.subr.bf16.mxu0 0
        %1222 = vmatpush2.bf16.xpose.msra.mxu0 0
        %1223 = vmatprep.subr.bf16.mxu0 0
        %1224 = vmatpush2.bf16.xpose.msra.mxu0 0
        %1225 = vmatprep.subr.bf16.mxu0 0
        %1226 = vmatpush2.bf16.xpose.msra.mxu0 0
        %1227 = vmatprep.subr.bf16.mxu0 0
        %1228 = vmatpush2.bf16.xpose.msra.mxu0 0
        %1229 = vmatprep.mubr.bf16.mxu0 0
        %1230 = vmatmul.mubr.bf16.gmra.mxu0 %v1192
        %v1231 = vpop.f32.mrf.mxu0
        %v1232 = vadd.f32 0.0, %v1231
        %v1233 = vpop.f32.mrf.mxu0
        %v1234 = vpop.f32.mrf.mxu0
        %v1235 = vpop.f32.mrf.mxu0
        %1236 = vdwg.mxu0
        %v1237 = vmul.f32 %v1232, 0.25
        %v1238 = vsel %vm378, %v1237, -inf
        %1239 = vmax.xlane.f32.xlu0 %v1238
        %v1240 = vpop.xlane.xlu0 %1239
        %v1241 = vsub.f32 %v1237, %v1240
        %v1242 = vmul.f32 %v1241, 1.442695
        %v1243 = vpow.pop %v1242
        %v1244 = vsel %vm378, %v1243, 0.0
        %1245 = vadd.xlane.f32.xlu0 %v1244
        %v1246 = vpop.xlane.xlu0 %1245
        %v1247 = vrcp.pop %v1246
        %v1248 = vmul.f32 %v1243, %v1247
        %v1249 = vpack.c.bf16 %v1248, %v1248
        %1250 = vrot.lane.b32.xlu0 %v427, 16
        %v1251 = vpop.permute.xlu0 %1250
        %v1254 = vsel %vm378, %v1249, 0
        %1256 = vmatprep.subr.bf16.mxu0 0
        %1257 = vmatpush1.bf16.msra.mxu0 0
        %1258 = vmatprep.subr.bf16.mxu0 0
        %1259 = vmatpush1.bf16.msra.mxu0 0
        %1260 = vmatprep.subr.bf16.mxu0 0
        %1261 = vmatpush1.bf16.msra.mxu0 0
        %1262 = vmatprep.subr.bf16.mxu0 0
        %1263 = vmatpush1.bf16.msra.mxu0 0
        %1264 = vmatprep.subr.bf16.mxu0 0
        %1265 = vmatpush1.bf16.msra.mxu0 0
        %1266 = vmatprep.subr.bf16.mxu0 0
        %1267 = vmatpush1.bf16.msra.mxu0 0
        %1268 = vmatprep.subr.bf16.mxu0 0
        %1269 = vmatpush1.bf16.msra.mxu0 0
        %1270 = vmatprep.subr.bf16.mxu0 0
        %1271 = vmatpush1.bf16.msra.mxu0 %v1251
        %1272 = vmatprep.subr.bf16.mxu0 0
        %1273 = vmatpush2.bf16.msra.mxu0 0
        %1274 = vmatprep.subr.bf16.mxu0 0
        %1275 = vmatpush2.bf16.msra.mxu0 0
        %1276 = vmatprep.subr.bf16.mxu0 0
        %1277 = vmatpush2.bf16.msra.mxu0 0
        %1278 = vmatprep.subr.bf16.mxu0 0
        %1279 = vmatpush2.bf16.msra.mxu0 0
        %1280 = vmatprep.subr.bf16.mxu0 0
        %1281 = vmatpush2.bf16.msra.mxu0 0
        %1282 = vmatprep.subr.bf16.mxu0 0
        %1283 = vmatpush2.bf16.msra.mxu0 0
        %1284 = vmatprep.subr.bf16.mxu0 0
        %1285 = vmatpush2.bf16.msra.mxu0 0
        %1286 = vmatprep.subr.bf16.mxu0 0
        %1287 = vmatpush2.bf16.msra.mxu0 0
        %1288 = vmatprep.mubr.bf16.mxu0 0
        %1289 = vmatmul.mubr.bf16.gmra.mxu0 %v1254
        %v1290 = vpop.f32.mrf.mxu0
        %v1291 = vadd.f32 0.0, %v1290
        %v1292 = vpop.f32.mrf.mxu0
        %v1293 = vpop.f32.mrf.mxu0
        %v1294 = vpop.f32.mrf.mxu0
        %1295 = vdwg.mxu0
        %1297 = vrot.lane.b32.xlu0 %v637, 16
        %v1298 = vpop.permute.xlu0 %1297
        %1301 = vrot.lane.b32.xlu0 %v746, 32
        %v1302 = vpop.permute.xlu0 %1301
        %1305 = vrot.lane.b32.xlu0 %v855, 48
        %v1306 = vpop.permute.xlu0 %1305
        %1309 = vrot.lane.b32.xlu0 %v964, 64
        %v1310 = vpop.permute.xlu0 %1309
        %1313 = vrot.lane.b32.xlu0 %v1073, 80
        %v1314 = vpop.permute.xlu0 %1313
        %1317 = vrot.lane.b32.xlu0 %v1182, 96
        %v1318 = vpop.permute.xlu0 %1317
        %1321 = vrot.lane.b32.xlu0 %v1291, 112
        %v1322 = vpop.permute.xlu0 %1321
        %v1324 = vsel %vm378, %v525, %v1298
        %v1325 = vsel %vm334, %v1324, %v1302
        %vm1326 = vcmask 392192
        %v1327 = vsel %vm1326, %v1325, %v1306
        %vm1328 = vcmask 523264
        %v1329 = vsel %vm1328, %v1327, %v1310
        %vm1330 = vcmask 654336
        %v1331 = vsel %vm1330, %v1329, %v1314
        %vm1332 = vcmask 785408
        %v1333 = vsel %vm1332, %v1331, %v1318
        %vm1334 = vcmask 916480
        %v1335 = vsel %vm1334, %v1333, %v1322
        %v1336 = vpack.c.bf16 %v1335, %v1335
        %v1337 = vld [vmem:[%s5] sm:$0x1]
        %v1339 = vlaneseq
        %v1340 = vshrl.u32 %v1339, 7
        %v1341 = vsub.s32 0, %v1340
        %v1342 = vrot.slane %v1337, %v1341
        %1344 = vmatprep.subr.bf16.mxu0 0
        %1345 = vmatpush1.bf16.msra.mxu0 %v333
        %1346 = vmatprep.subr.bf16.mxu0 0
        %1347 = vmatpush1.bf16.msra.mxu0 %v332
        %1348 = vmatprep.subr.bf16.mxu0 0
        %1349 = vmatpush1.bf16.msra.mxu0 %v331
        %1350 = vmatprep.subr.bf16.mxu0 0
        %1351 = vmatpush1.bf16.msra.mxu0 %v330
        %1352 = vmatprep.subr.bf16.mxu0 0
        %1353 = vmatpush1.bf16.msra.mxu0 %v329
        %1354 = vmatprep.subr.bf16.mxu0 0
        %1355 = vmatpush1.bf16.msra.mxu0 %v328
        %1356 = vmatprep.subr.bf16.mxu0 0
        %1357 = vmatpush1.bf16.msra.mxu0 %v327
        %1358 = vmatprep.subr.bf16.mxu0 0
        %1359 = vmatpush1.bf16.msra.mxu0 %v326
        %1360 = vmatprep.subr.bf16.mxu0 0
        %1361 = vmatpush2.bf16.msra.mxu0 0
        %1362 = vmatprep.subr.bf16.mxu0 0
        %1363 = vmatpush2.bf16.msra.mxu0 0
        %1364 = vmatprep.subr.bf16.mxu0 0
        %1365 = vmatpush2.bf16.msra.mxu0 0
        %1366 = vmatprep.subr.bf16.mxu0 0
        %1367 = vmatpush2.bf16.msra.mxu0 0
        %1368 = vmatprep.subr.bf16.mxu0 0
        %1369 = vmatpush2.bf16.msra.mxu0 0
        %1370 = vmatprep.subr.bf16.mxu0 0
        %1371 = vmatpush2.bf16.msra.mxu0 0
        %1372 = vmatprep.subr.bf16.mxu0 0
        %1373 = vmatpush2.bf16.msra.mxu0 0
        %1374 = vmatprep.subr.bf16.mxu0 0
        %1375 = vmatpush2.bf16.msra.mxu0 0
        %1376 = vmatprep.mubr.bf16.mxu0 0
        %1377 = vmatmul.mubr.bf16.gmra.mxu0 %v1336
        %v1378 = vpop.f32.mrf.mxu0
        %v1379 = vadd.f32 %v1342, %v1378
        %v1380 = vpop.f32.mrf.mxu0
        %v1381 = vpop.f32.mrf.mxu0
        %v1382 = vpop.f32.mrf.mxu0
        %1383 = vdwg.mxu0
        %1384 = vst.msk [vmem:[%s279] sm:$0xff] %vm334, %v1379
        %s1385 = sand.u32 %s180, 1
        %s1386 = scalar_lea.sflag [#allocation3], %s1385
        %s1387 = sand.u32 %s180, 1
        %s1388 = smul.addr %s1387, 8
        %s1389 = scalar_lea.vmem [#allocation2], %s1388
        // Predicated region
        $region45: #{cross_self_transformer.1} parent=43 // pred_check
          %p1390 = pneg %p190
        $region46: #{cross_self_transformer.1} parent=43 // pred_check_branch
          %1392 = sbr.rel (%p1390) target = $region48
        $region47: #{cross_self_transformer.1} parent=43 // pred_region
          %s1394 = ssub.s32 128, 128
          %1395 = vsyncadd %s1386, %s1394
          %s1396 = sadd.s32 %s25, %s24
          %s1397 = smul.addr %s1396, 128
          %s1398 = scalar_lea.hbm %s6, %s1397
          %s1400 = sshll.u32 %s1389, 4
          %s1401 = int_to_ptr.vmem [resolvable:$true] %s1400
          %1403 = dma.vmem_to_hbm [thread:$0]  %s1401, 128, %s1398, %s1386
        $region48: #{cross_self_transformer.1} parent=43 // pred_fallthru
          _
      $region44: #{cross_self_transformer.1} parent=5 // pred_fallthru
        _
      %p1404 = scmp.le.s32.totalorder 2, %s15
      // Predicated region
      $region49: #{cross_self_transformer.1} parent=5 // pred_check
        %p1405 = pneg %p1404
      $region50: #{cross_self_transformer.1} parent=5 // pred_check_branch
        %1407 = sbr.rel (%p1405) target = $region52
      $region51: #{cross_self_transformer.1} parent=5 // pred_region
        %s1408 = ssub.s32 %s15, 2
        // Predicated region
        $region53: #{cross_self_transformer.1} parent=51 // pred_check
          %p1409 = pneg %p196
        $region54: #{cross_self_transformer.1} parent=51 // pred_check_branch
          %1411 = sbr.rel (%p1409) target = $region56
        $region55: #{cross_self_transformer.1} parent=51 // pred_region
          %s1412 = sand.u32 %s181, 1
          %s1413 = scalar_lea.sflag [#allocation3], %s1412
          %s1414 = sand.u32 %s181, 1
          %s1415 = smul.addr %s1414, 8
          %s1416 = scalar_lea.vmem [#allocation2], %s1415
          %1417 = dma.done %s1413, 128
        $region56: #{cross_self_transformer.1} parent=51 // pred_fallthru
          _
      $region52: #{cross_self_transformer.1} parent=5 // pred_fallthru
        _
    $region6: #{cross_self_transformer.1} parent=1 // loop_footer
      %s19 = sadd.s32 1, %s15
    $region7: #{cross_self_transformer.1} parent=1 // loop_footer_branch
      %14 = sbr.rel target = $region3
    $region8: #{cross_self_transformer.1} parent=1 // loop_exit
      _
    %1418 = vsyncpa [#allocation3], 1
    %s1419 = scalar_lea.sflag [#allocation3], 1
    %1420 = vsyncpa %s1419, 1

</llo_original>
